<compile_context>
chip_gen: v5e
topology: v5e:2x2
jax: 0.10.0
libtpu: 0.0.40
codegen_flags: <defaults>
</compile_context>

<pallas_src>
from functools import partial

import jax
import jax.numpy as jnp
from jax.experimental import pallas as pl
from jax.experimental.pallas import tpu as pltpu


def _adn_kernel(x_ref, w1_ref, b1_ref, w2_ref, b2_ref, out_ref, acc_ref, *, inv_hw):
    ci = pl.program_id(1)

    @pl.when(ci == 0)
    def _():
        acc_ref[...] = jnp.zeros_like(acc_ref)

    # Spatial mean of this channel chunk (lane-axis reduction on the VPU/XLU),
    # then the partial fc1 product for these channels, accumulated in f32.
    pooled = jnp.sum(x_ref[...], axis=-1) * inv_hw                   # (tb, tc) f32
    acc_ref[...] += jnp.dot(pooled, w1_ref[...],
                            preferred_element_type=jnp.float32)      # (tb, hidden)

    @pl.when(ci == pl.num_programs(1) - 1)
    def _():
        h = jnp.maximum(acc_ref[...] + b1_ref[...], 0.0)             # fc1 bias + ReLU
        logits = jnp.dot(h, w2_ref[...],
                         preferred_element_type=jnp.float32) + b2_ref[...]
        # Row softmax over the padded (lane-dense) attribute axis; padded
        # columns carry bias -1e30 so they contribute exp(.) == 0.
        m = jnp.max(logits, axis=1, keepdims=True)
        e = jnp.exp(logits - m)
        denom = jnp.sum(e, axis=1, keepdims=True)
        out_ref[0] = (e * pl.reciprocal(denom, approx=True)).astype(out_ref.dtype)


def prepare_params(w1, b1, w2, b2):
    """One-time parameter preprocessing (transpose + lane-dense padding).

    w1: [hidden, C], b1: [hidden], w2: [num_attr, hidden], b2: [num_attr]
    (PyTorch nn.Linear layout).  Do NOT repeat per forward call.
    """
    hidden, C = w1.shape
    num_attr = w2.shape[0]
    npad = ((num_attr + 127) // 128) * 128            # lane-dense attribute axis
    w1t = jnp.transpose(w1).astype(jnp.float32)       # (C, hidden)
    b1r = b1.reshape(1, hidden).astype(jnp.float32)
    w2p = jnp.zeros((hidden, npad), jnp.float32).at[:, :num_attr].set(
        jnp.transpose(w2).astype(jnp.float32))
    b2p = jnp.full((1, npad), -1e30, jnp.float32).at[0, :num_attr].set(
        b2.astype(jnp.float32))
    return w1t, b1r, w2p, b2p, num_attr


# Per-buffer x-block target: big enough to amortize per-grid-step overhead,
# small enough that double-buffering fits comfortably inside v7x's 64 MiB VMEM
# (v5e/v6e with 128 MiB could take larger, but 4 MiB is already near roofline).
_PER_BUFFER_TARGET = 4 * 1024 * 1024


def aesthetic_decomposition_forward(image_features, prepared_params):
    """image_features: [B, C, H, W] float32 (NCHW, as in PyTorch).
    prepared_params: output of prepare_params().
    Returns: [B, num_attr] float32 softmax attribute weights.
    """
    w1t, b1r, w2p, b2p, num_attr = prepared_params
    B, C, H, W = image_features.shape
    HW = H * W
    hidden = w1t.shape[1]
    npad = w2p.shape[1]
    assert w1t.shape[0] == C, "feature_dim mismatch between input and fc1"

    # Free contiguous reshape: NCHW viewed as [B, C, H*W]; the spatial axis
    # lands on the TPU lane axis inside the kernel.
    x = image_features.reshape(B, C, HW)

    # ---- tiling -------------------------------------------------------------
    per_b_bytes = C * HW * 4
    if per_b_bytes <= _PER_BUFFER_TARGET:
        tc = C                                         # single channel chunk: w1 stays resident
        tb = max(1, min(B, _PER_BUFFER_TARGET // per_b_bytes))
        while B % tb:
            tb -= 1
        if B >= 2 and B // tb < 2:                     # >= 2 "parallel" steps for v7x megacore
            tb = max(1, B // 2)
            while B % tb:
                tb -= 1
    else:
        # One batch element's block is too large: split the channel axis and
        # carry the contraction in the tiny (tb, hidden) accumulator.
        tb = 1
        tc = C
        if C % 8 == 0:
            for cand in range(8, C + 1, 8):
                if C % cand == 0 and cand * HW * 4 <= _PER_BUFFER_TARGET:
                    tc = cand
        # TODO(synk): if C has no small-enough multiple-of-8 divisor, the
        # full-C block may exceed the VMEM target for very large C*H*W; a
        # spatial split with a cross-tile combine would be needed there.

    n_bt = B // tb
    n_cc = C // tc
    grid = (n_bt, n_cc)

    # ---- VMEM budget (computed from the real footprint, generation-safe) ----
    footprint = (
        2 * (tb * tc * HW * 4)                               # double-buffered x blocks
        + 2 * (tc * hidden * 4)                              # w1 block(s)
        + 2 * (tb * npad * 4)                                # output block
        + 2 * (hidden * 4 + hidden * npad * 4 + npad * 4)    # b1, w2, b2
        + tb * hidden * 4                                    # accumulator scratch
    )
    vmem_limit = int(min(64 * 1024 * 1024,
                         max(16 * 1024 * 1024, footprint + 8 * 1024 * 1024)))

    out_padded = pl.pallas_call(
        partial(_adn_kernel, inv_hw=1.0 / float(HW)),
        # 3-D output so the stored block is (tb, npad) with tb equal to its
        # full axis extent and npad lane-dense -> unmasked full-lane stores.
        out_shape=jax.ShapeDtypeStruct((n_bt, tb, npad), jnp.float32),
        grid_spec=pltpu.PrefetchScalarGridSpec(
            num_scalar_prefetch=0,
            grid=grid,
            in_specs=[
                pl.BlockSpec((tb, tc, HW), lambda bi, ci: (bi, ci, 0)),   # x (f32, native NCHW view)
                pl.BlockSpec((tc, hidden), lambda bi, ci: (ci, 0)),       # w1 (resident when n_cc == 1)
                pl.BlockSpec((1, hidden), lambda bi, ci: (0, 0)),         # b1
                pl.BlockSpec((hidden, npad), lambda bi, ci: (0, 0)),      # w2 (zero-padded columns)
                pl.BlockSpec((1, npad), lambda bi, ci: (0, 0)),           # b2 (-1e30-padded columns)
            ],
            out_specs=pl.BlockSpec((1, tb, npad), lambda bi, ci: (bi, 0, 0)),
            scratch_shapes=[pltpu.VMEM((tb, hidden), jnp.float32)],
        ),
        compiler_params=pltpu.CompilerParams(
            dimension_semantics=("parallel", "arbitrary"),
            vmem_limit_bytes=vmem_limit,
        ),
    )(x, w1t, b1r, w2p, b2p)

    return out_padded.reshape(B, npad)[:, :num_attr]


def _reference_forward(image_features, w1, b1, w2, b2):
    """Pure-f32 PyTorch-equivalent reference."""
    hi = jax.lax.Precision.HIGHEST
    pooled = jnp.mean(image_features.astype(jnp.float32), axis=(2, 3))
    h = jax.nn.relu(jnp.dot(pooled, w1.T, precision=hi) + b1)
    logits = jnp.dot(h, w2.T, precision=hi) + b2
    return jax.nn.softmax(logits, axis=1)


if __name__ == "__main__":
    # Module defaults: feature_dim=2048, num_attributes=11, fc1 hidden=128.
    # H = W = 7 (ResNet-style 7x7 feature map) also exercises the
    # non-multiple-of-8 spatial path the previous version rejected.
    B, C, H, W = 2, 2048, 7, 7
    hidden, num_attr = 128, 11

    key = jax.random.PRNGKey(0)
    k_x, k_w1, k_b1, k_w2, k_b2 = jax.random.split(key, 5)

    image_features = jax.random.normal(k_x, (B, C, H, W), dtype=jnp.float32)
    # Deterministic synthetic parameters (nn.Linear-shaped).
    w1 = jax.random.normal(k_w1, (hidden, C), dtype=jnp.float32) * 0.02
    b1 = jax.random.normal(k_b1, (hidden,), dtype=jnp.float32) * 0.02
    w2 = jax.random.normal(k_w2, (num_attr, hidden), dtype=jnp.float32) * 0.02
    b2 = jax.random.normal(k_b2, (num_attr,), dtype=jnp.float32) * 0.02

    # One-time parameter preparation (transpose + lane-dense padding).
    params = prepare_params(w1, b1, w2, b2)

    out = aesthetic_decomposition_forward(image_features, params)
    out = jax.block_until_ready(out)

    ref = _reference_forward(image_features, w1, b1, w2, b2)

    assert out.shape == (B, num_attr)
    assert bool(jnp.all(jnp.isfinite(out)))
    assert jnp.allclose(jnp.sum(out, axis=1), 1.0, atol=5e-3), "softmax rows must sum to ~1"
    assert jnp.allclose(out, ref, atol=2e-3), "mismatch vs f32 PyTorch-equivalent reference"

    print("KERNEL_OK")
</pallas_src>

<mosaic_0001>
module attributes {stable_mosaic.version = 11 : i64} {
  func.func @_adn_kernel(%arg0: i32, %arg1: i32, %arg2: memref<1x2048x49xf32, #tpu.memory_space<vmem>>, %arg3: memref<2048x128xf32, #tpu.memory_space<vmem>>, %arg4: memref<1x128xf32, #tpu.memory_space<vmem>>, %arg5: memref<128x128xf32, #tpu.memory_space<vmem>>, %arg6: memref<1x128xf32, #tpu.memory_space<vmem>>, %arg7: memref<1x1x128xf32, #tpu.memory_space<vmem>>, %arg8: memref<1x128xf32, #tpu.memory_space<vmem>>) attributes {dimension_semantics = [#tpu.dimension_semantics<parallel>, #tpu.dimension_semantics<arbitrary>], iteration_bounds = array<i64: 2, 1>, scalar_prefetch = 0 : i64, scratch_operands = 1 : i64, tpu.core_type = #tpu.core_type<tc>, window_params = [{transform_indices = @transform_0, window_bounds = array<i64: 1, 2048, 49>}, {transform_indices = @transform_1, window_bounds = array<i64: 2048, 128>}, {pipeline_mode = #tpu.pipeline_mode<synchronous>, transform_indices = @transform_2, window_bounds = array<i64: 1, 128>}, {pipeline_mode = #tpu.pipeline_mode<synchronous>, transform_indices = @transform_3, window_bounds = array<i64: 128, 128>}, {pipeline_mode = #tpu.pipeline_mode<synchronous>, transform_indices = @transform_4, window_bounds = array<i64: 1, 128>}, {transform_indices = @transform_5, window_bounds = array<i64: 1, 1, 128>}]} {
    %c0_i32 = arith.constant 0 : i32
    %0 = arith.cmpi eq, %arg1, %c0_i32 : i32
    %1 = arith.extui %0 : i1 to i32
    %c0_i32_0 = arith.constant 0 : i32
    %2 = arith.cmpi ne, %1, %c0_i32_0 : i32
    scf.if %2 {
      %cst_13 = arith.constant 0.000000e+00 : f32
      %15 = vector.broadcast %cst_13 : f32 to vector<1x128xf32>
      %c0_14 = arith.constant 0 : index
      %c0_15 = arith.constant 0 : index
      %16 = vector.load %arg8[%c0_14, %c0_15] : memref<1x128xf32, #tpu.memory_space<vmem>>, vector<1x128xf32>
      tpu.vector_store %arg8[%c0_14, %c0_15], %15 {strides = array<i32>} : memref<1x128xf32, #tpu.memory_space<vmem>>, vector<1x128xf32>,
    } else {
    }
    %c0 = arith.constant 0 : index
    %c0_1 = arith.constant 0 : index
    %c0_2 = arith.constant 0 : index
    %3 = vector.load %arg2[%c0, %c0_1, %c0_2] : memref<1x2048x49xf32, #tpu.memory_space<vmem>>, vector<1x2048x49xf32>
    %cst = arith.constant dense<0.000000e+00> : vector<1x2048xf32>
    %4 = vector.multi_reduction <add>, %3, %cst [2] : vector<1x2048x49xf32> to vector<1x2048xf32>
    %cst_3 = arith.constant 0.0204081628 : f32
    %5 = vector.broadcast %cst_3 : f32 to vector<1x2048xf32>
    %6 = arith.mulf %4, %5 : vector<1x2048xf32>
    %c0_4 = arith.constant 0 : index
    %c0_5 = arith.constant 0 : index
    %7 = vector.load %arg8[%c0_4, %c0_5] : memref<1x128xf32, #tpu.memory_space<vmem>>, vector<1x128xf32>
    %c0_6 = arith.constant 0 : index
    %c0_7 = arith.constant 0 : index
    %8 = vector.load %arg3[%c0_6, %c0_7] : memref<2048x128xf32, #tpu.memory_space<vmem>>, vector<2048x128xf32>
    %cst_8 = arith.constant dense<0.000000e+00> : vector<1x128xf32>
    %9 = tpu.matmul %6, %8, %cst_8 {dimension_numbers = #tpu.dot_dimension_numbers<[1], [0], [0], [1], [0, 0, 1, 1], [], []>} : vector<1x2048xf32>, vector<2048x128xf32>, vector<1x128xf32> -> vector<1x128xf32>
    %10 = arith.addf %7, %9 : vector<1x128xf32>
    %c0_9 = arith.constant 0 : index
    %c0_10 = arith.constant 0 : index
    %11 = vector.load %arg8[%c0_9, %c0_10] : memref<1x128xf32, #tpu.memory_space<vmem>>, vector<1x128xf32>
    tpu.vector_store %arg8[%c0_9, %c0_10], %10 {strides = array<i32>} : memref<1x128xf32, #tpu.memory_space<vmem>>, vector<1x128xf32>,
    %c0_i32_11 = arith.constant 0 : i32
    %12 = arith.cmpi eq, %arg1, %c0_i32_11 : i32
    %13 = arith.extui %12 : i1 to i32
    %c0_i32_12 = arith.constant 0 : i32
    %14 = arith.cmpi ne, %13, %c0_i32_12 : i32
    scf.if %14 {
      %c0_13 = arith.constant 0 : index
      %c0_14 = arith.constant 0 : index
      %15 = vector.load %arg8[%c0_13, %c0_14] : memref<1x128xf32, #tpu.memory_space<vmem>>, vector<1x128xf32>
      %c0_15 = arith.constant 0 : index
      %c0_16 = arith.constant 0 : index
      %16 = vector.load %arg4[%c0_15, %c0_16] : memref<1x128xf32, #tpu.memory_space<vmem>>, vector<1x128xf32>
      %17 = arith.addf %15, %16 : vector<1x128xf32>
      %cst_17 = arith.constant 0.000000e+00 : f32
      %18 = vector.broadcast %cst_17 : f32 to vector<1x128xf32>
      %19 = arith.maximumf %17, %18 : vector<1x128xf32>
      %c0_18 = arith.constant 0 : index
      %c0_19 = arith.constant 0 : index
      %20 = vector.load %arg5[%c0_18, %c0_19] : memref<128x128xf32, #tpu.memory_space<vmem>>, vector<128x128xf32>
      %cst_20 = arith.constant dense<0.000000e+00> : vector<1x128xf32>
      %21 = tpu.matmul %19, %20, %cst_20 {dimension_numbers = #tpu.dot_dimension_numbers<[1], [0], [0], [1], [0, 0, 1, 1], [], []>} : vector<1x128xf32>, vector<128x128xf32>, vector<1x128xf32> -> vector<1x128xf32>
      %c0_21 = arith.constant 0 : index
      %c0_22 = arith.constant 0 : index
      %22 = vector.load %arg6[%c0_21, %c0_22] : memref<1x128xf32, #tpu.memory_space<vmem>>, vector<1x128xf32>
      %23 = arith.addf %21, %22 : vector<1x128xf32>
      %cst_23 = arith.constant dense<0xFF800000> : vector<1xf32>
      %24 = vector.multi_reduction <maximumf>, %23, %cst_23 [1] : vector<1x128xf32> to vector<1xf32>
      %25 = vector.shape_cast %24 : vector<1xf32> to vector<1x1xf32>
      %26 = vector.broadcast %25 : vector<1x1xf32> to vector<1x128xf32>
      %27 = arith.subf %23, %26 : vector<1x128xf32>
      %28 = math.exp %27 : vector<1x128xf32>
      %cst_24 = arith.constant dense<0.000000e+00> : vector<1xf32>
      %29 = vector.multi_reduction <add>, %28, %cst_24 [1] : vector<1x128xf32> to vector<1xf32>
      %30 = vector.shape_cast %29 : vector<1xf32> to vector<1x1xf32>
      %31 = tpu.reciprocal %30 {approx = true} : vector<1x1xf32> -> vector<1x1xf32>
      %32 = vector.broadcast %31 : vector<1x1xf32> to vector<1x128xf32>
      %33 = arith.mulf %28, %32 : vector<1x128xf32>
      %c0_25 = arith.constant 0 : index
      %c0_26 = arith.constant 0 : index
      %c0_27 = arith.constant 0 : index
      %34 = vector.load %arg7[%c0_25, %c0_26, %c0_27] : memref<1x1x128xf32, #tpu.memory_space<vmem>>, vector<1x1x128xf32>
      %35 = vector.shape_cast %34 : vector<1x1x128xf32> to vector<1x128xf32>
      %36 = vector.shape_cast %33 : vector<1x128xf32> to vector<1x1x128xf32>
      tpu.vector_store %arg7[%c0_25, %c0_26, %c0_27], %36 {strides = array<i32>} : memref<1x1x128xf32, #tpu.memory_space<vmem>>, vector<1x1x128xf32>,
    } else {
    }
    return
  }
  func.func @transform_0(%arg0: i32, %arg1: i32) -> (i32, i32, i32) {
    %c0_i32 = arith.constant 0 : i32
    %c0_i32_0 = arith.constant 0 : i32
    return %arg0, %arg1, %c0_i32 : i32, i32, i32
  }
  func.func @transform_1(%arg0: i32, %arg1: i32) -> (i32, i32) {
    %c0_i32 = arith.constant 0 : i32
    %c0_i32_0 = arith.constant 0 : i32
    return %arg1, %c0_i32 : i32, i32
  }
  func.func @transform_2(%arg0: i32, %arg1: i32) -> (i32, i32) {
    %c0_i32 = arith.constant 0 : i32
    %c0_i32_0 = arith.constant 0 : i32
    %c0_i32_1 = arith.constant 0 : i32
    return %c0_i32, %c0_i32_0 : i32, i32
  }
  func.func @transform_3(%arg0: i32, %arg1: i32) -> (i32, i32) {
    %c0_i32 = arith.constant 0 : i32
    %c0_i32_0 = arith.constant 0 : i32
    %c0_i32_1 = arith.constant 0 : i32
    return %c0_i32, %c0_i32_0 : i32, i32
  }
  func.func @transform_4(%arg0: i32, %arg1: i32) -> (i32, i32) {
    %c0_i32 = arith.constant 0 : i32
    %c0_i32_0 = arith.constant 0 : i32
    %c0_i32_1 = arith.constant 0 : i32
    return %c0_i32, %c0_i32_0 : i32, i32
  }
  func.func @transform_5(%arg0: i32, %arg1: i32) -> (i32, i32, i32) {
    %c0_i32 = arith.constant 0 : i32
    %c0_i32_0 = arith.constant 0 : i32
    %c0_i32_1 = arith.constant 0 : i32
    return %arg0, %c0_i32, %c0_i32_0 : i32, i32, i32
  }
}

</mosaic_0001>

<llo_original>
// kernel: tpu_custom_call.1
$region0: #{tpu_custom_call.1}
  #allocation0 [shape = 'u32[]', space=smem, size = 0x4, offset = 0x4, fixed_abs, tag = 'smem constant byte address 0x4 - core index']
  #allocation1 [shape = 'u32[72,128]{1,0:T(1,128)}', space=vmem, size = 0x9000, scoped, tag = 'internal scratch']
  #allocation2 [shape = 'f32[1,128]{1,0:T(1,128)}', space=vmem, size = 0x200, scoped, tag = 'scratch operand']
  %s0 = inlined_call_operand.vmem [shape: f32[2,2048,49], index: 0, kind: input, shape index: {}]
  %s1 = inlined_call_operand.vmem [shape: f32[2048,128], index: 1, kind: input, shape index: {}]
  %s2 = inlined_call_operand.vmem [shape: f32[1,128], index: 2, kind: input, shape index: {}]
  %s3 = inlined_call_operand.vmem [shape: f32[128,128], index: 3, kind: input, shape index: {}]
  %s4 = inlined_call_operand.vmem [shape: f32[1,128], index: 4, kind: input, shape index: {}]
  %s5 = inlined_call_operand.hbm [shape: f32[2,1,128], index: 5, kind: output, shape index: {}]
  %s6 = sld [smem:[#allocation0]]
  $region61: #{tpu_custom_call.1} parent=0
    _
  %s8 = ssub.s32 1, %s6
  %s9 = scalar_select 0, %s8, %s6
  $region1: #{tpu_custom_call.1} parent=0
    #allocation3 [shape = 'u8[1024]{0}', space=vmem, size = 0x400, scoped, tag = 'output window, operand 0']
    #allocation4 [shape = 's32[2]{0}', space=sflag, size = 0x8, scoped, tag = 'scoped memory for tpu_custom_call.1']
    %10 = vsyncpa [#allocation4], 0
    %s11 = scalar_lea.sflag [#allocation4], 1
    %12 = vsyncpa %s11, 0
    loop: start=0, step=1, limit=4
    $region2: #{tpu_custom_call.1} parent=1 // loop_pre_header
      _
    $region3: #{tpu_custom_call.1} parent=1 // loop_header
      %s14 = sphi 0, %s18
      %p15 = scmp.ge.s32.totalorder %s14, 4
      %s21 = sphi 0, %s33
      %s22 = sphi 0, %s29
      %s23 = sphi 0, %s21
      %s24 = sphi 0, %s22
      %s25 = sphi 0, %s23
      %s26 = sphi 0, %s24
      %s38 = sphi 0, %s40
      %s41 = sphi 0, %s38
      %s42 = sphi 0, %s41
      %s58 = sphi 0, %s42
      %s64 = sphi 0, %s66
      %s67 = sphi 0, %s64
      %s68 = sphi 0, %s67
      %s84 = sphi 0, %s68
      %s88 = sphi 0, %s88
      %s90 = sphi 0, %s88
      %s91 = sphi 0, %s90
      %s105 = sphi 0, %s91
      %s109 = sphi 0, %s109
      %s111 = sphi 0, %s109
      %s112 = sphi 0, %s111
      %s126 = sphi 0, %s112
      %s130 = sphi 0, %s130
      %s132 = sphi 0, %s130
      %s133 = sphi 0, %s132
      %s147 = sphi 0, %s133
      %s153 = sphi 0, %s155
      %s156 = sphi 0, %s153
      %s157 = sphi 0, %s156
      %s173 = sphi 0, %s157
    $region4: #{tpu_custom_call.1} parent=1 // loop_header_branch
      %17 = sbr.rel (%p15) target = $region8
    $region5: #{tpu_custom_call.1} parent=1 // loop_body
      %s19 = ssub.s32 %s14, 1
      %s20 = ssub.s32 %s14, 2
      %s27 = sadd.s32 1, %s22
      %p28 = scmp.ge.s32.totalorder %s27, 1
      %s29 = scalar_select %p28, 0, %s27
      %s30 = sadd.s32 1, %s21
      %s31 = scalar_select %p28, %s30, %s21
      %p32 = scmp.ge.s32.totalorder %s31, 2
      %s33 = scalar_select %p32, 0, %s31
      %s34 = ssub.s32 %s21, %s33
      %s35 = ssub.s32 %s22, %s29
      %s36 = sor.u32 %s34, %s35
      %p37 = scmp.eq.s32.totalorder %s36, 0
      %s39 = sadd.s32 %s38, 1
      %s40 = scalar_select %p37, %s38, %s39
      %p43 = pneg %p37
      %p44 = scmp.eq.s32.totalorder %s14, 1
      %p45 = por %p43, %p44
      %p46 = scmp.ne.s32.totalorder %s38, %s41
      %p47 = scmp.eq.s32.totalorder %s14, 0
      %p48 = por %p46, %p47
      %p49 = scmp.ne.s32.totalorder %s38, %s41
      %p50 = scmp.eq.s32.totalorder %s19, 1
      %p51 = por %p49, %p50
      %p52 = scmp.ne.s32.totalorder %s41, %s42
      %p53 = scmp.eq.s32.totalorder %s19, 0
      %p54 = por %p52, %p53
      %p55 = scmp.ne.s32.totalorder %s41, %s42
      %p56 = scmp.eq.s32.totalorder %s20, 1
      %p57 = por %p55, %p56
      %p59 = scmp.ne.s32.totalorder %s42, %s58
      %p60 = scmp.eq.s32.totalorder %s20, 0
      %p61 = por %p59, %p60
      %s62 = ssub.s32 %s22, %s29
      %p63 = scmp.eq.s32.totalorder %s62, 0
      %s65 = sadd.s32 %s64, 1
      %s66 = scalar_select %p63, %s64, %s65
      %p69 = pneg %p63
      %p70 = scmp.eq.s32.totalorder %s14, 1
      %p71 = por %p69, %p70
      %p72 = scmp.ne.s32.totalorder %s64, %s67
      %p73 = scmp.eq.s32.totalorder %s14, 0
      %p74 = por %p72, %p73
      %p75 = scmp.ne.s32.totalorder %s64, %s67
      %p76 = scmp.eq.s32.totalorder %s19, 1
      %p77 = por %p75, %p76
      %p78 = scmp.ne.s32.totalorder %s67, %s68
      %p79 = scmp.eq.s32.totalorder %s19, 0
      %p80 = por %p78, %p79
      %p81 = scmp.ne.s32.totalorder %s67, %s68
      %p82 = scmp.eq.s32.totalorder %s20, 1
      %p83 = por %p81, %p82
      %p85 = scmp.ne.s32.totalorder %s68, %s84
      %p86 = scmp.eq.s32.totalorder %s20, 0
      %p87 = por %p85, %p86
      %s89 = sadd.s32 %s88, 1
      %p92 = scmp.eq.s32.totalorder %s14, 1
      %p93 = scmp.ne.s32.totalorder %s88, %s90
      %p94 = scmp.eq.s32.totalorder %s14, 0
      %p95 = por %p93, %p94
      %p96 = scmp.ne.s32.totalorder %s88, %s90
      %p97 = scmp.eq.s32.totalorder %s19, 1
      %p98 = por %p96, %p97
      %p99 = scmp.ne.s32.totalorder %s90, %s91
      %p100 = scmp.eq.s32.totalorder %s19, 0
      %p101 = por %p99, %p100
      %p102 = scmp.ne.s32.totalorder %s90, %s91
      %p103 = scmp.eq.s32.totalorder %s20, 1
      %p104 = por %p102, %p103
      %p106 = scmp.ne.s32.totalorder %s91, %s105
      %p107 = scmp.eq.s32.totalorder %s20, 0
      %p108 = por %p106, %p107
      %s110 = sadd.s32 %s109, 1
      %p113 = scmp.eq.s32.totalorder %s14, 1
      %p114 = scmp.ne.s32.totalorder %s109, %s111
      %p115 = scmp.eq.s32.totalorder %s14, 0
      %p116 = por %p114, %p115
      %p117 = scmp.ne.s32.totalorder %s109, %s111
      %p118 = scmp.eq.s32.totalorder %s19, 1
      %p119 = por %p117, %p118
      %p120 = scmp.ne.s32.totalorder %s111, %s112
      %p121 = scmp.eq.s32.totalorder %s19, 0
      %p122 = por %p120, %p121
      %p123 = scmp.ne.s32.totalorder %s111, %s112
      %p124 = scmp.eq.s32.totalorder %s20, 1
      %p125 = por %p123, %p124
      %p127 = scmp.ne.s32.totalorder %s112, %s126
      %p128 = scmp.eq.s32.totalorder %s20, 0
      %p129 = por %p127, %p128
      %s131 = sadd.s32 %s130, 1
      %p134 = scmp.eq.s32.totalorder %s14, 1
      %p135 = scmp.ne.s32.totalorder %s130, %s132
      %p136 = scmp.eq.s32.totalorder %s14, 0
      %p137 = por %p135, %p136
      %p138 = scmp.ne.s32.totalorder %s130, %s132
      %p139 = scmp.eq.s32.totalorder %s19, 1
      %p140 = por %p138, %p139
      %p141 = scmp.ne.s32.totalorder %s132, %s133
      %p142 = scmp.eq.s32.totalorder %s19, 0
      %p143 = por %p141, %p142
      %p144 = scmp.ne.s32.totalorder %s132, %s133
      %p145 = scmp.eq.s32.totalorder %s20, 1
      %p146 = por %p144, %p145
      %p148 = scmp.ne.s32.totalorder %s133, %s147
      %p149 = scmp.eq.s32.totalorder %s20, 0
      %p150 = por %p148, %p149
      %s151 = ssub.s32 %s21, %s33
      %p152 = scmp.eq.s32.totalorder %s151, 0
      %s154 = sadd.s32 %s153, 1
      %s155 = scalar_select %p152, %s153, %s154
      %p158 = pneg %p152
      %p159 = scmp.eq.s32.totalorder %s14, 1
      %p160 = por %p158, %p159
      %p161 = scmp.ne.s32.totalorder %s153, %s156
      %p162 = scmp.eq.s32.totalorder %s14, 0
      %p163 = por %p161, %p162
      %p164 = scmp.ne.s32.totalorder %s153, %s156
      %p165 = scmp.eq.s32.totalorder %s19, 1
      %p166 = por %p164, %p165
      %p167 = scmp.ne.s32.totalorder %s156, %s157
      %p168 = scmp.eq.s32.totalorder %s19, 0
      %p169 = por %p167, %p168
      %p170 = scmp.ne.s32.totalorder %s156, %s157
      %p171 = scmp.eq.s32.totalorder %s20, 1
      %p172 = por %p170, %p171
      %p174 = scmp.ne.s32.totalorder %s157, %s173
      %p175 = scmp.eq.s32.totalorder %s20, 0
      %p176 = por %p174, %p175
      %p177 = scmp.le.s32.totalorder 1, %s14
      %p178 = scmp.lt.s32.totalorder %s14, 3
      %p179 = pnand %p177, %p178
      %p180 = pneg %p179
      // Predicated region
      $region9: #{tpu_custom_call.1} parent=5 // pred_check
        _
      $region10: #{tpu_custom_call.1} parent=5 // pred_check_branch
        %182 = sbr.rel (%p179) target = $region12
      $region11: #{tpu_custom_call.1} parent=5 // pred_region
        %s183 = ssub.s32 %s14, 1
        // Predicated region
        $region13: #{tpu_custom_call.1} parent=11 // pred_check
          %p184 = pneg %p80
        $region14: #{tpu_custom_call.1} parent=11 // pred_check_branch
          %186 = sbr.rel (%p184) target = $region16
        $region15: #{tpu_custom_call.1} parent=11 // pred_region
          %s187 = smul.u32 256, %s24
          %p188 = scmp.lt.s32.totalorder %s187, 255
          %s189 = scalar_select %p188, %s187, 255
          %s190 = smul.addr %s189, 8
          %s191 = scalar_lea.vmem %s1, %s190
          %s192 = smul.u32 256, %s24
        $region16: #{tpu_custom_call.1} parent=11 // pred_fallthru
          _
        // Predicated region
        $region17: #{tpu_custom_call.1} parent=11 // pred_check
          %p193 = pneg %p101
        $region18: #{tpu_custom_call.1} parent=11 // pred_check_branch
          %195 = sbr.rel (%p193) target = $region20
        $region19: #{tpu_custom_call.1} parent=11 // pred_region
          _
        $region20: #{tpu_custom_call.1} parent=11 // pred_fallthru
          _
        // Predicated region
        $region21: #{tpu_custom_call.1} parent=11 // pred_check
          %p196 = pneg %p122
        $region22: #{tpu_custom_call.1} parent=11 // pred_check_branch
          %198 = sbr.rel (%p196) target = $region24
        $region23: #{tpu_custom_call.1} parent=11 // pred_region
          _
        $region24: #{tpu_custom_call.1} parent=11 // pred_fallthru
          _
        // Predicated region
        $region25: #{tpu_custom_call.1} parent=11 // pred_check
          %p199 = pneg %p143
        $region26: #{tpu_custom_call.1} parent=11 // pred_check_branch
          %201 = sbr.rel (%p199) target = $region28
        $region27: #{tpu_custom_call.1} parent=11 // pred_region
          _
        $region28: #{tpu_custom_call.1} parent=11 // pred_fallthru
          _
      $region12: #{tpu_custom_call.1} parent=5 // pred_fallthru
        _
      %p202 = scmp.lt.s32.totalorder %s14, 2
      // Predicated region
      $region29: #{tpu_custom_call.1} parent=5 // pred_check
        %p203 = pneg %p202
      $region30: #{tpu_custom_call.1} parent=5 // pred_check_branch
        %205 = sbr.rel (%p203) target = $region32
      $region31: #{tpu_custom_call.1} parent=5 // pred_region
        // Predicated region
        $region33: #{tpu_custom_call.1} parent=31 // pred_check
          %p206 = pneg %p48
        $region34: #{tpu_custom_call.1} parent=31 // pred_check_branch
          %208 = sbr.rel (%p206) target = $region36
        $region35: #{tpu_custom_call.1} parent=31 // pred_region
          %s209 = smul.u32 256, %s22
          %p210 = scmp.lt.s32.totalorder %s21, 1
          %s211 = scalar_select %p210, %s21, 1
          %p212 = scmp.lt.s32.totalorder %s209, 255
          %s213 = scalar_select %p212, %s209, 255
          %s214 = smul.addr %s211, 256
          %s215 = sadd.s32 %s213, %s214
          %s216 = smul.addr %s215, 8
          %s217 = scalar_lea.vmem %s0, %s216
          %s218 = smul.u32 256, %s22
        $region36: #{tpu_custom_call.1} parent=31 // pred_fallthru
          _
      $region32: #{tpu_custom_call.1} parent=5 // pred_fallthru
        _
      %p219 = scmp.le.s32.totalorder 1, %s14
      %p220 = scmp.lt.s32.totalorder %s14, 3
      %p221 = pnand %p219, %p220
      %p222 = pneg %p221
      // Predicated region
      $region37: #{tpu_custom_call.1} parent=5 // pred_check
        _
      $region38: #{tpu_custom_call.1} parent=5 // pred_check_branch
        %224 = sbr.rel (%p221) target = $region40
      $region39: #{tpu_custom_call.1} parent=5 // pred_region
        %s225 = ssub.s32 %s14, 1
        %s226 = smul.u32 256, %s24
        %p227 = scmp.lt.s32.totalorder %s23, 1
        %s228 = scalar_select %p227, %s23, 1
        %p229 = scmp.lt.s32.totalorder %s226, 255
        %s230 = scalar_select %p229, %s226, 255
        %s231 = smul.addr %s228, 256
        %s232 = sadd.s32 %s230, %s231
        %s233 = smul.addr %s232, 8
        %s234 = scalar_lea.vmem %s0, %s233
        %p235 = pneg %p54
        %p236 = pneg %p51
        %s237 = smul.u32 256, %s24
        %p238 = scmp.lt.s32.totalorder %s237, 255
        %s239 = scalar_select %p238, %s237, 255
        %s240 = smul.addr %s239, 8
        %s241 = scalar_lea.vmem %s1, %s240
        %p242 = pneg %p80
        %p243 = pneg %p77
        %p244 = pneg %p101
        %p245 = pneg %p98
        %p246 = pneg %p122
        %p247 = pneg %p119
        %p248 = pneg %p143
        %p249 = pneg %p140
        %p250 = pneg %p169
        %p251 = pneg %p166
        %s252 = sand.u32 %s156, 1
        %s253 = scalar_lea.sflag [#allocation4], %s252
        %s254 = sand.u32 %s156, 1
        %s255 = scalar_lea.vmem [#allocation3], %s254
        %s256 = smul.u32 256, %s24
        %p257 = scmp.lt.s32.totalorder %s23, 1
        %s258 = scalar_select %p257, %s23, 1
        %p259 = scmp.lt.s32.totalorder %s256, 255
        %s260 = scalar_select %p259, %s256, 255
        %s261 = smul.addr %s258, 256
        %s262 = sadd.s32 %s260, %s261
        %s263 = smul.addr %s262, 8
        %s264 = scalar_lea.vmem %s0, %s263
        %s265 = smul.u32 256, %s24
        %s266 = smul.u32 256, %s24
        %p267 = scmp.lt.s32.totalorder %s266, 255
        %s268 = scalar_select %p267, %s266, 255
        %s269 = smul.addr %s268, 8
        %s270 = scalar_lea.vmem %s1, %s269
        %s271 = smul.u32 256, %s24
        %p272 = scmp.eq.s32.totalorder %s24, 0
        // Predicated region
        $region41: #{tpu_custom_call.1} parent=39 // pred_check
          %p273 = pneg %p272
        $region42: #{tpu_custom_call.1} parent=39 // pred_check_branch
          %275 = sbr.rel (%p273) target = $region44
        $region43: #{tpu_custom_call.1} parent=39 // pred_region
          %276 = vst [vmem:[#allocation2] sm:$0x1] 0.0
        $region44: #{tpu_custom_call.1} parent=39 // pred_fallthru
          _
        %v277 = vld [vmem:[%s264] sm:$0xff]
        %v278 = vld [vmem:[%s264 + $0x8] sm:$0xff]
        %v279 = vld [vmem:[%s264 + $0x10] sm:$0xff]
        %v280 = vld [vmem:[%s264 + $0x18] sm:$0xff]
        %v281 = vld [vmem:[%s264 + $0x20] sm:$0xff]
        %v282 = vld [vmem:[%s264 + $0x28] sm:$0xff]
        %v283 = vld [vmem:[%s264 + $0x30] sm:$0xff]
        %v284 = vld [vmem:[%s264 + $0x38] sm:$0xff]
        %v285 = vld [vmem:[%s264 + $0x40] sm:$0xff]
        %v286 = vld [vmem:[%s264 + $0x48] sm:$0xff]
        %v287 = vld [vmem:[%s264 + $0x50] sm:$0xff]
        %v288 = vld [vmem:[%s264 + $0x58] sm:$0xff]
        %v289 = vld [vmem:[%s264 + $0x60] sm:$0xff]
        %v290 = vld [vmem:[%s264 + $0x68] sm:$0xff]
        %v291 = vld [vmem:[%s264 + $0x70] sm:$0xff]
        %v292 = vld [vmem:[%s264 + $0x78] sm:$0xff]
        %v293 = vld [vmem:[%s264 + $0x80] sm:$0xff]
        %v294 = vld [vmem:[%s264 + $0x88] sm:$0xff]
        %v295 = vld [vmem:[%s264 + $0x90] sm:$0xff]
        %v296 = vld [vmem:[%s264 + $0x98] sm:$0xff]
        %v297 = vld [vmem:[%s264 + $0xa0] sm:$0xff]
        %v298 = vld [vmem:[%s264 + $0xa8] sm:$0xff]
        %v299 = vld [vmem:[%s264 + $0xb0] sm:$0xff]
        %v300 = vld [vmem:[%s264 + $0xb8] sm:$0xff]
        %v301 = vld [vmem:[%s264 + $0xc0] sm:$0xff]
        %v302 = vld [vmem:[%s264 + $0xc8] sm:$0xff]
        %v303 = vld [vmem:[%s264 + $0xd0] sm:$0xff]
        %v304 = vld [vmem:[%s264 + $0xd8] sm:$0xff]
        %v305 = vld [vmem:[%s264 + $0xe0] sm:$0xff]
        %v306 = vld [vmem:[%s264 + $0xe8] sm:$0xff]
        %v307 = vld [vmem:[%s264 + $0xf0] sm:$0xff]
        %v308 = vld [vmem:[%s264 + $0xf8] sm:$0xff]
        %v309 = vld [vmem:[%s264 + $0x100] sm:$0xff]
        %v310 = vld [vmem:[%s264 + $0x108] sm:$0xff]
        %v311 = vld [vmem:[%s264 + $0x110] sm:$0xff]
        %v312 = vld [vmem:[%s264 + $0x118] sm:$0xff]
        %v313 = vld [vmem:[%s264 + $0x120] sm:$0xff]
        %v314 = vld [vmem:[%s264 + $0x128] sm:$0xff]
        %v315 = vld [vmem:[%s264 + $0x130] sm:$0xff]
        %v316 = vld [vmem:[%s264 + $0x138] sm:$0xff]
        %v317 = vld [vmem:[%s264 + $0x140] sm:$0xff]
        %v318 = vld [vmem:[%s264 + $0x148] sm:$0xff]
        %v319 = vld [vmem:[%s264 + $0x150] sm:$0xff]
        %v320 = vld [vmem:[%s264 + $0x158] sm:$0xff]
        %v321 = vld [vmem:[%s264 + $0x160] sm:$0xff]
        %v322 = vld [vmem:[%s264 + $0x168] sm:$0xff]
        %v323 = vld [vmem:[%s264 + $0x170] sm:$0xff]
        %v324 = vld [vmem:[%s264 + $0x178] sm:$0xff]
        %v325 = vld [vmem:[%s264 + $0x180] sm:$0xff]
        %v326 = vld [vmem:[%s264 + $0x188] sm:$0xff]
        %v327 = vld [vmem:[%s264 + $0x190] sm:$0xff]
        %v328 = vld [vmem:[%s264 + $0x198] sm:$0xff]
        %v329 = vld [vmem:[%s264 + $0x1a0] sm:$0xff]
        %v330 = vld [vmem:[%s264 + $0x1a8] sm:$0xff]
        %v331 = vld [vmem:[%s264 + $0x1b0] sm:$0xff]
        %v332 = vld [vmem:[%s264 + $0x1b8] sm:$0xff]
        %v333 = vld [vmem:[%s264 + $0x1c0] sm:$0xff]
        %v334 = vld [vmem:[%s264 + $0x1c8] sm:$0xff]
        %v335 = vld [vmem:[%s264 + $0x1d0] sm:$0xff]
        %v336 = vld [vmem:[%s264 + $0x1d8] sm:$0xff]
        %v337 = vld [vmem:[%s264 + $0x1e0] sm:$0xff]
        %v338 = vld [vmem:[%s264 + $0x1e8] sm:$0xff]
        %v339 = vld [vmem:[%s264 + $0x1f0] sm:$0xff]
        %v340 = vld [vmem:[%s264 + $0x1f8] sm:$0xff]
        %v341 = vld [vmem:[%s264 + $0x200] sm:$0xff]
        %v342 = vld [vmem:[%s264 + $0x208] sm:$0xff]
        %v343 = vld [vmem:[%s264 + $0x210] sm:$0xff]
        %v344 = vld [vmem:[%s264 + $0x218] sm:$0xff]
        %v345 = vld [vmem:[%s264 + $0x220] sm:$0xff]
        %v346 = vld [vmem:[%s264 + $0x228] sm:$0xff]
        %v347 = vld [vmem:[%s264 + $0x230] sm:$0xff]
        %v348 = vld [vmem:[%s264 + $0x238] sm:$0xff]
        %v349 = vld [vmem:[%s264 + $0x240] sm:$0xff]
        %v350 = vld [vmem:[%s264 + $0x248] sm:$0xff]
        %v351 = vld [vmem:[%s264 + $0x250] sm:$0xff]
        %v352 = vld [vmem:[%s264 + $0x258] sm:$0xff]
        %v353 = vld [vmem:[%s264 + $0x260] sm:$0xff]
        %v354 = vld [vmem:[%s264 + $0x268] sm:$0xff]
        %v355 = vld [vmem:[%s264 + $0x270] sm:$0xff]
        %v356 = vld [vmem:[%s264 + $0x278] sm:$0xff]
        %v357 = vld [vmem:[%s264 + $0x280] sm:$0xff]
        %v358 = vld [vmem:[%s264 + $0x288] sm:$0xff]
        %v359 = vld [vmem:[%s264 + $0x290] sm:$0xff]
        %v360 = vld [vmem:[%s264 + $0x298] sm:$0xff]
        %v361 = vld [vmem:[%s264 + $0x2a0] sm:$0xff]
        %v362 = vld [vmem:[%s264 + $0x2a8] sm:$0xff]
        %v363 = vld [vmem:[%s264 + $0x2b0] sm:$0xff]
        %v364 = vld [vmem:[%s264 + $0x2b8] sm:$0xff]
        %v365 = vld [vmem:[%s264 + $0x2c0] sm:$0xff]
        %v366 = vld [vmem:[%s264 + $0x2c8] sm:$0xff]
        %v367 = vld [vmem:[%s264 + $0x2d0] sm:$0xff]
        %v368 = vld [vmem:[%s264 + $0x2d8] sm:$0xff]
        %v369 = vld [vmem:[%s264 + $0x2e0] sm:$0xff]
        %v370 = vld [vmem:[%s264 + $0x2e8] sm:$0xff]
        %v371 = vld [vmem:[%s264 + $0x2f0] sm:$0xff]
        %v372 = vld [vmem:[%s264 + $0x2f8] sm:$0xff]
        %v373 = vld [vmem:[%s264 + $0x300] sm:$0xff]
        %v374 = vld [vmem:[%s264 + $0x308] sm:$0xff]
        %v375 = vld [vmem:[%s264 + $0x310] sm:$0xff]
        %v376 = vld [vmem:[%s264 + $0x318] sm:$0xff]
        %v377 = vld [vmem:[%s264 + $0x320] sm:$0xff]
        %v378 = vld [vmem:[%s264 + $0x328] sm:$0xff]
        %v379 = vld [vmem:[%s264 + $0x330] sm:$0xff]
        %v380 = vld [vmem:[%s264 + $0x338] sm:$0xff]
        %v381 = vld [vmem:[%s264 + $0x340] sm:$0xff]
        %v382 = vld [vmem:[%s264 + $0x348] sm:$0xff]
        %v383 = vld [vmem:[%s264 + $0x350] sm:$0xff]
        %v384 = vld [vmem:[%s264 + $0x358] sm:$0xff]
        %v385 = vld [vmem:[%s264 + $0x360] sm:$0xff]
        %v386 = vld [vmem:[%s264 + $0x368] sm:$0xff]
        %v387 = vld [vmem:[%s264 + $0x370] sm:$0xff]
        %v388 = vld [vmem:[%s264 + $0x378] sm:$0xff]
        %v389 = vld [vmem:[%s264 + $0x380] sm:$0xff]
        %v390 = vld [vmem:[%s264 + $0x388] sm:$0xff]
        %v391 = vld [vmem:[%s264 + $0x390] sm:$0xff]
        %v392 = vld [vmem:[%s264 + $0x398] sm:$0xff]
        %v393 = vld [vmem:[%s264 + $0x3a0] sm:$0xff]
        %v394 = vld [vmem:[%s264 + $0x3a8] sm:$0xff]
        %v395 = vld [vmem:[%s264 + $0x3b0] sm:$0xff]
        %v396 = vld [vmem:[%s264 + $0x3b8] sm:$0xff]
        %v397 = vld [vmem:[%s264 + $0x3c0] sm:$0xff]
        %v398 = vld [vmem:[%s264 + $0x3c8] sm:$0xff]
        %v399 = vld [vmem:[%s264 + $0x3d0] sm:$0xff]
        %v400 = vld [vmem:[%s264 + $0x3d8] sm:$0xff]
        %v401 = vld [vmem:[%s264 + $0x3e0] sm:$0xff]
        %v402 = vld [vmem:[%s264 + $0x3e8] sm:$0xff]
        %v403 = vld [vmem:[%s264 + $0x3f0] sm:$0xff]
        %v404 = vld [vmem:[%s264 + $0x3f8] sm:$0xff]
        %v405 = vld [vmem:[%s264 + $0x400] sm:$0xff]
        %v406 = vld [vmem:[%s264 + $0x408] sm:$0xff]
        %v407 = vld [vmem:[%s264 + $0x410] sm:$0xff]
        %v408 = vld [vmem:[%s264 + $0x418] sm:$0xff]
        %v409 = vld [vmem:[%s264 + $0x420] sm:$0xff]
        %v410 = vld [vmem:[%s264 + $0x428] sm:$0xff]
        %v411 = vld [vmem:[%s264 + $0x430] sm:$0xff]
        %v412 = vld [vmem:[%s264 + $0x438] sm:$0xff]
        %v413 = vld [vmem:[%s264 + $0x440] sm:$0xff]
        %v414 = vld [vmem:[%s264 + $0x448] sm:$0xff]
        %v415 = vld [vmem:[%s264 + $0x450] sm:$0xff]
        %v416 = vld [vmem:[%s264 + $0x458] sm:$0xff]
        %v417 = vld [vmem:[%s264 + $0x460] sm:$0xff]
        %v418 = vld [vmem:[%s264 + $0x468] sm:$0xff]
        %v419 = vld [vmem:[%s264 + $0x470] sm:$0xff]
        %v420 = vld [vmem:[%s264 + $0x478] sm:$0xff]
        %v421 = vld [vmem:[%s264 + $0x480] sm:$0xff]
        %v422 = vld [vmem:[%s264 + $0x488] sm:$0xff]
        %v423 = vld [vmem:[%s264 + $0x490] sm:$0xff]
        %v424 = vld [vmem:[%s264 + $0x498] sm:$0xff]
        %v425 = vld [vmem:[%s264 + $0x4a0] sm:$0xff]
        %v426 = vld [vmem:[%s264 + $0x4a8] sm:$0xff]
        %v427 = vld [vmem:[%s264 + $0x4b0] sm:$0xff]
        %v428 = vld [vmem:[%s264 + $0x4b8] sm:$0xff]
        %v429 = vld [vmem:[%s264 + $0x4c0] sm:$0xff]
        %v430 = vld [vmem:[%s264 + $0x4c8] sm:$0xff]
        %v431 = vld [vmem:[%s264 + $0x4d0] sm:$0xff]
        %v432 = vld [vmem:[%s264 + $0x4d8] sm:$0xff]
        %v433 = vld [vmem:[%s264 + $0x4e0] sm:$0xff]
        %v434 = vld [vmem:[%s264 + $0x4e8] sm:$0xff]
        %v435 = vld [vmem:[%s264 + $0x4f0] sm:$0xff]
        %v436 = vld [vmem:[%s264 + $0x4f8] sm:$0xff]
        %v437 = vld [vmem:[%s264 + $0x500] sm:$0xff]
        %v438 = vld [vmem:[%s264 + $0x508] sm:$0xff]
        %v439 = vld [vmem:[%s264 + $0x510] sm:$0xff]
        %v440 = vld [vmem:[%s264 + $0x518] sm:$0xff]
        %v441 = vld [vmem:[%s264 + $0x520] sm:$0xff]
        %v442 = vld [vmem:[%s264 + $0x528] sm:$0xff]
        %v443 = vld [vmem:[%s264 + $0x530] sm:$0xff]
        %v444 = vld [vmem:[%s264 + $0x538] sm:$0xff]
        %v445 = vld [vmem:[%s264 + $0x540] sm:$0xff]
        %v446 = vld [vmem:[%s264 + $0x548] sm:$0xff]
        %v447 = vld [vmem:[%s264 + $0x550] sm:$0xff]
        %v448 = vld [vmem:[%s264 + $0x558] sm:$0xff]
        %v449 = vld [vmem:[%s264 + $0x560] sm:$0xff]
        %v450 = vld [vmem:[%s264 + $0x568] sm:$0xff]
        %v451 = vld [vmem:[%s264 + $0x570] sm:$0xff]
        %v452 = vld [vmem:[%s264 + $0x578] sm:$0xff]
        %v453 = vld [vmem:[%s264 + $0x580] sm:$0xff]
        %v454 = vld [vmem:[%s264 + $0x588] sm:$0xff]
        %v455 = vld [vmem:[%s264 + $0x590] sm:$0xff]
        %v456 = vld [vmem:[%s264 + $0x598] sm:$0xff]
        %v457 = vld [vmem:[%s264 + $0x5a0] sm:$0xff]
        %v458 = vld [vmem:[%s264 + $0x5a8] sm:$0xff]
        %v459 = vld [vmem:[%s264 + $0x5b0] sm:$0xff]
        %v460 = vld [vmem:[%s264 + $0x5b8] sm:$0xff]
        %v461 = vld [vmem:[%s264 + $0x5c0] sm:$0xff]
        %v462 = vld [vmem:[%s264 + $0x5c8] sm:$0xff]
        %v463 = vld [vmem:[%s264 + $0x5d0] sm:$0xff]
        %v464 = vld [vmem:[%s264 + $0x5d8] sm:$0xff]
        %v465 = vld [vmem:[%s264 + $0x5e0] sm:$0xff]
        %v466 = vld [vmem:[%s264 + $0x5e8] sm:$0xff]
        %v467 = vld [vmem:[%s264 + $0x5f0] sm:$0xff]
        %v468 = vld [vmem:[%s264 + $0x5f8] sm:$0xff]
        %v469 = vld [vmem:[%s264 + $0x600] sm:$0xff]
        %v470 = vld [vmem:[%s264 + $0x608] sm:$0xff]
        %v471 = vld [vmem:[%s264 + $0x610] sm:$0xff]
        %v472 = vld [vmem:[%s264 + $0x618] sm:$0xff]
        %v473 = vld [vmem:[%s264 + $0x620] sm:$0xff]
        %v474 = vld [vmem:[%s264 + $0x628] sm:$0xff]
        %v475 = vld [vmem:[%s264 + $0x630] sm:$0xff]
        %v476 = vld [vmem:[%s264 + $0x638] sm:$0xff]
        %v477 = vld [vmem:[%s264 + $0x640] sm:$0xff]
        %v478 = vld [vmem:[%s264 + $0x648] sm:$0xff]
        %v479 = vld [vmem:[%s264 + $0x650] sm:$0xff]
        %v480 = vld [vmem:[%s264 + $0x658] sm:$0xff]
        %v481 = vld [vmem:[%s264 + $0x660] sm:$0xff]
        %v482 = vld [vmem:[%s264 + $0x668] sm:$0xff]
        %v483 = vld [vmem:[%s264 + $0x670] sm:$0xff]
        %v484 = vld [vmem:[%s264 + $0x678] sm:$0xff]
        %v485 = vld [vmem:[%s264 + $0x680] sm:$0xff]
        %v486 = vld [vmem:[%s264 + $0x688] sm:$0xff]
        %v487 = vld [vmem:[%s264 + $0x690] sm:$0xff]
        %v488 = vld [vmem:[%s264 + $0x698] sm:$0xff]
        %v489 = vld [vmem:[%s264 + $0x6a0] sm:$0xff]
        %v490 = vld [vmem:[%s264 + $0x6a8] sm:$0xff]
        %v491 = vld [vmem:[%s264 + $0x6b0] sm:$0xff]
        %v492 = vld [vmem:[%s264 + $0x6b8] sm:$0xff]
        %v493 = vld [vmem:[%s264 + $0x6c0] sm:$0xff]
        %v494 = vld [vmem:[%s264 + $0x6c8] sm:$0xff]
        %v495 = vld [vmem:[%s264 + $0x6d0] sm:$0xff]
        %v496 = vld [vmem:[%s264 + $0x6d8] sm:$0xff]
        %v497 = vld [vmem:[%s264 + $0x6e0] sm:$0xff]
        %v498 = vld [vmem:[%s264 + $0x6e8] sm:$0xff]
        %v499 = vld [vmem:[%s264 + $0x6f0] sm:$0xff]
        %v500 = vld [vmem:[%s264 + $0x6f8] sm:$0xff]
        %v501 = vld [vmem:[%s264 + $0x700] sm:$0xff]
        %v502 = vld [vmem:[%s264 + $0x708] sm:$0xff]
        %v503 = vld [vmem:[%s264 + $0x710] sm:$0xff]
        %v504 = vld [vmem:[%s264 + $0x718] sm:$0xff]
        %v505 = vld [vmem:[%s264 + $0x720] sm:$0xff]
        %v506 = vld [vmem:[%s264 + $0x728] sm:$0xff]
        %v507 = vld [vmem:[%s264 + $0x730] sm:$0xff]
        %v508 = vld [vmem:[%s264 + $0x738] sm:$0xff]
        %v509 = vld [vmem:[%s264 + $0x740] sm:$0xff]
        %v510 = vld [vmem:[%s264 + $0x748] sm:$0xff]
        %v511 = vld [vmem:[%s264 + $0x750] sm:$0xff]
        %v512 = vld [vmem:[%s264 + $0x758] sm:$0xff]
        %v513 = vld [vmem:[%s264 + $0x760] sm:$0xff]
        %v514 = vld [vmem:[%s264 + $0x768] sm:$0xff]
        %v515 = vld [vmem:[%s264 + $0x770] sm:$0xff]
        %v516 = vld [vmem:[%s264 + $0x778] sm:$0xff]
        %v517 = vld [vmem:[%s264 + $0x780] sm:$0xff]
        %v518 = vld [vmem:[%s264 + $0x788] sm:$0xff]
        %v519 = vld [vmem:[%s264 + $0x790] sm:$0xff]
        %v520 = vld [vmem:[%s264 + $0x798] sm:$0xff]
        %v521 = vld [vmem:[%s264 + $0x7a0] sm:$0xff]
        %v522 = vld [vmem:[%s264 + $0x7a8] sm:$0xff]
        %v523 = vld [vmem:[%s264 + $0x7b0] sm:$0xff]
        %v524 = vld [vmem:[%s264 + $0x7b8] sm:$0xff]
        %v525 = vld [vmem:[%s264 + $0x7c0] sm:$0xff]
        %v526 = vld [vmem:[%s264 + $0x7c8] sm:$0xff]
        %v527 = vld [vmem:[%s264 + $0x7d0] sm:$0xff]
        %v528 = vld [vmem:[%s264 + $0x7d8] sm:$0xff]
        %v529 = vld [vmem:[%s264 + $0x7e0] sm:$0xff]
        %v530 = vld [vmem:[%s264 + $0x7e8] sm:$0xff]
        %v531 = vld [vmem:[%s264 + $0x7f0] sm:$0xff]
        %v532 = vld [vmem:[%s264 + $0x7f8] sm:$0xff]
        %vm533 = vcmask 400384
        %v534 = vsel %vm533, %v277, 0.0
        %535 = vadd.xlane.f32.xlu0 %v534
        %v536 = vpop.xlane.xlu0 %535
        %v537 = vsel %vm533, %v278, 0.0
        %538 = vadd.xlane.f32.xlu0 %v537
        %v539 = vpop.xlane.xlu0 %538
        %v540 = vsel %vm533, %v279, 0.0
        %541 = vadd.xlane.f32.xlu0 %v540
        %v542 = vpop.xlane.xlu0 %541
        %v543 = vsel %vm533, %v280, 0.0
        %544 = vadd.xlane.f32.xlu0 %v543
        %v545 = vpop.xlane.xlu0 %544
        %v546 = vsel %vm533, %v281, 0.0
        %547 = vadd.xlane.f32.xlu0 %v546
        %v548 = vpop.xlane.xlu0 %547
        %v549 = vsel %vm533, %v282, 0.0
        %550 = vadd.xlane.f32.xlu0 %v549
        %v551 = vpop.xlane.xlu0 %550
        %v552 = vsel %vm533, %v283, 0.0
        %553 = vadd.xlane.f32.xlu0 %v552
        %v554 = vpop.xlane.xlu0 %553
        %v555 = vsel %vm533, %v284, 0.0
        %556 = vadd.xlane.f32.xlu0 %v555
        %v557 = vpop.xlane.xlu0 %556
        %v558 = vsel %vm533, %v285, 0.0
        %559 = vadd.xlane.f32.xlu0 %v558
        %v560 = vpop.xlane.xlu0 %559
        %v561 = vsel %vm533, %v286, 0.0
        %562 = vadd.xlane.f32.xlu0 %v561
        %v563 = vpop.xlane.xlu0 %562
        %v564 = vsel %vm533, %v287, 0.0
        %565 = vadd.xlane.f32.xlu0 %v564
        %v566 = vpop.xlane.xlu0 %565
        %v567 = vsel %vm533, %v288, 0.0
        %568 = vadd.xlane.f32.xlu0 %v567
        %v569 = vpop.xlane.xlu0 %568
        %v570 = vsel %vm533, %v289, 0.0
        %571 = vadd.xlane.f32.xlu0 %v570
        %v572 = vpop.xlane.xlu0 %571
        %v573 = vsel %vm533, %v290, 0.0
        %574 = vadd.xlane.f32.xlu0 %v573
        %v575 = vpop.xlane.xlu0 %574
        %v576 = vsel %vm533, %v291, 0.0
        %577 = vadd.xlane.f32.xlu0 %v576
        %v578 = vpop.xlane.xlu0 %577
        %v579 = vsel %vm533, %v292, 0.0
        %580 = vadd.xlane.f32.xlu0 %v579
        %v581 = vpop.xlane.xlu0 %580
        %v582 = vsel %vm533, %v293, 0.0
        %583 = vadd.xlane.f32.xlu0 %v582
        %v584 = vpop.xlane.xlu0 %583
        %v585 = vsel %vm533, %v294, 0.0
        %586 = vadd.xlane.f32.xlu0 %v585
        %v587 = vpop.xlane.xlu0 %586
        %v588 = vsel %vm533, %v295, 0.0
        %589 = vadd.xlane.f32.xlu0 %v588
        %v590 = vpop.xlane.xlu0 %589
        %v591 = vsel %vm533, %v296, 0.0
        %592 = vadd.xlane.f32.xlu0 %v591
        %v593 = vpop.xlane.xlu0 %592
        %v594 = vsel %vm533, %v297, 0.0
        %595 = vadd.xlane.f32.xlu0 %v594
        %v596 = vpop.xlane.xlu0 %595
        %v597 = vsel %vm533, %v298, 0.0
        %598 = vadd.xlane.f32.xlu0 %v597
        %v599 = vpop.xlane.xlu0 %598
        %v600 = vsel %vm533, %v299, 0.0
        %601 = vadd.xlane.f32.xlu0 %v600
        %v602 = vpop.xlane.xlu0 %601
        %v603 = vsel %vm533, %v300, 0.0
        %604 = vadd.xlane.f32.xlu0 %v603
        %v605 = vpop.xlane.xlu0 %604
        %v606 = vsel %vm533, %v301, 0.0
        %607 = vadd.xlane.f32.xlu0 %v606
        %v608 = vpop.xlane.xlu0 %607
        %v609 = vsel %vm533, %v302, 0.0
        %610 = vadd.xlane.f32.xlu0 %v609
        %v611 = vpop.xlane.xlu0 %610
        %v612 = vsel %vm533, %v303, 0.0
        %613 = vadd.xlane.f32.xlu0 %v612
        %v614 = vpop.xlane.xlu0 %613
        %v615 = vsel %vm533, %v304, 0.0
        %616 = vadd.xlane.f32.xlu0 %v615
        %v617 = vpop.xlane.xlu0 %616
        %v618 = vsel %vm533, %v305, 0.0
        %619 = vadd.xlane.f32.xlu0 %v618
        %v620 = vpop.xlane.xlu0 %619
        %v621 = vsel %vm533, %v306, 0.0
        %622 = vadd.xlane.f32.xlu0 %v621
        %v623 = vpop.xlane.xlu0 %622
        %v624 = vsel %vm533, %v307, 0.0
        %625 = vadd.xlane.f32.xlu0 %v624
        %v626 = vpop.xlane.xlu0 %625
        %v627 = vsel %vm533, %v308, 0.0
        %628 = vadd.xlane.f32.xlu0 %v627
        %v629 = vpop.xlane.xlu0 %628
        %v630 = vsel %vm533, %v309, 0.0
        %631 = vadd.xlane.f32.xlu0 %v630
        %v632 = vpop.xlane.xlu0 %631
        %v633 = vsel %vm533, %v310, 0.0
        %634 = vadd.xlane.f32.xlu0 %v633
        %v635 = vpop.xlane.xlu0 %634
        %v636 = vsel %vm533, %v311, 0.0
        %637 = vadd.xlane.f32.xlu0 %v636
        %v638 = vpop.xlane.xlu0 %637
        %v639 = vsel %vm533, %v312, 0.0
        %640 = vadd.xlane.f32.xlu0 %v639
        %v641 = vpop.xlane.xlu0 %640
        %v642 = vsel %vm533, %v313, 0.0
        %643 = vadd.xlane.f32.xlu0 %v642
        %v644 = vpop.xlane.xlu0 %643
        %v645 = vsel %vm533, %v314, 0.0
        %646 = vadd.xlane.f32.xlu0 %v645
        %v647 = vpop.xlane.xlu0 %646
        %v648 = vsel %vm533, %v315, 0.0
        %649 = vadd.xlane.f32.xlu0 %v648
        %v650 = vpop.xlane.xlu0 %649
        %v651 = vsel %vm533, %v316, 0.0
        %652 = vadd.xlane.f32.xlu0 %v651
        %v653 = vpop.xlane.xlu0 %652
        %v654 = vsel %vm533, %v317, 0.0
        %655 = vadd.xlane.f32.xlu0 %v654
        %v656 = vpop.xlane.xlu0 %655
        %v657 = vsel %vm533, %v318, 0.0
        %658 = vadd.xlane.f32.xlu0 %v657
        %v659 = vpop.xlane.xlu0 %658
        %v660 = vsel %vm533, %v319, 0.0
        %661 = vadd.xlane.f32.xlu0 %v660
        %v662 = vpop.xlane.xlu0 %661
        %v663 = vsel %vm533, %v320, 0.0
        %664 = vadd.xlane.f32.xlu0 %v663
        %v665 = vpop.xlane.xlu0 %664
        %v666 = vsel %vm533, %v321, 0.0
        %667 = vadd.xlane.f32.xlu0 %v666
        %v668 = vpop.xlane.xlu0 %667
        %v669 = vsel %vm533, %v322, 0.0
        %670 = vadd.xlane.f32.xlu0 %v669
        %v671 = vpop.xlane.xlu0 %670
        %v672 = vsel %vm533, %v323, 0.0
        %673 = vadd.xlane.f32.xlu0 %v672
        %v674 = vpop.xlane.xlu0 %673
        %v675 = vsel %vm533, %v324, 0.0
        %676 = vadd.xlane.f32.xlu0 %v675
        %v677 = vpop.xlane.xlu0 %676
        %v678 = vsel %vm533, %v325, 0.0
        %679 = vadd.xlane.f32.xlu0 %v678
        %v680 = vpop.xlane.xlu0 %679
        %v681 = vsel %vm533, %v326, 0.0
        %682 = vadd.xlane.f32.xlu0 %v681
        %v683 = vpop.xlane.xlu0 %682
        %v684 = vsel %vm533, %v327, 0.0
        %685 = vadd.xlane.f32.xlu0 %v684
        %v686 = vpop.xlane.xlu0 %685
        %v687 = vsel %vm533, %v328, 0.0
        %688 = vadd.xlane.f32.xlu0 %v687
        %v689 = vpop.xlane.xlu0 %688
        %v690 = vsel %vm533, %v329, 0.0
        %691 = vadd.xlane.f32.xlu0 %v690
        %v692 = vpop.xlane.xlu0 %691
        %v693 = vsel %vm533, %v330, 0.0
        %694 = vadd.xlane.f32.xlu0 %v693
        %v695 = vpop.xlane.xlu0 %694
        %v696 = vsel %vm533, %v331, 0.0
        %697 = vadd.xlane.f32.xlu0 %v696
        %v698 = vpop.xlane.xlu0 %697
        %v699 = vsel %vm533, %v332, 0.0
        %700 = vadd.xlane.f32.xlu0 %v699
        %v701 = vpop.xlane.xlu0 %700
        %v702 = vsel %vm533, %v333, 0.0
        %703 = vadd.xlane.f32.xlu0 %v702
        %v704 = vpop.xlane.xlu0 %703
        %v705 = vsel %vm533, %v334, 0.0
        %706 = vadd.xlane.f32.xlu0 %v705
        %v707 = vpop.xlane.xlu0 %706
        %v708 = vsel %vm533, %v335, 0.0
        %709 = vadd.xlane.f32.xlu0 %v708
        %v710 = vpop.xlane.xlu0 %709
        %v711 = vsel %vm533, %v336, 0.0
        %712 = vadd.xlane.f32.xlu0 %v711
        %v713 = vpop.xlane.xlu0 %712
        %v714 = vsel %vm533, %v337, 0.0
        %715 = vadd.xlane.f32.xlu0 %v714
        %v716 = vpop.xlane.xlu0 %715
        %v717 = vsel %vm533, %v338, 0.0
        %718 = vadd.xlane.f32.xlu0 %v717
        %v719 = vpop.xlane.xlu0 %718
        %v720 = vsel %vm533, %v339, 0.0
        %721 = vadd.xlane.f32.xlu0 %v720
        %v722 = vpop.xlane.xlu0 %721
        %v723 = vsel %vm533, %v340, 0.0
        %724 = vadd.xlane.f32.xlu0 %v723
        %v725 = vpop.xlane.xlu0 %724
        %v726 = vsel %vm533, %v341, 0.0
        %727 = vadd.xlane.f32.xlu0 %v726
        %v728 = vpop.xlane.xlu0 %727
        %v729 = vsel %vm533, %v342, 0.0
        %730 = vadd.xlane.f32.xlu0 %v729
        %v731 = vpop.xlane.xlu0 %730
        %v732 = vsel %vm533, %v343, 0.0
        %733 = vadd.xlane.f32.xlu0 %v732
        %v734 = vpop.xlane.xlu0 %733
        %v735 = vsel %vm533, %v344, 0.0
        %736 = vadd.xlane.f32.xlu0 %v735
        %v737 = vpop.xlane.xlu0 %736
        %v738 = vsel %vm533, %v345, 0.0
        %739 = vadd.xlane.f32.xlu0 %v738
        %v740 = vpop.xlane.xlu0 %739
        %v741 = vsel %vm533, %v346, 0.0
        %742 = vadd.xlane.f32.xlu0 %v741
        %v743 = vpop.xlane.xlu0 %742
        %v744 = vsel %vm533, %v347, 0.0
        %745 = vadd.xlane.f32.xlu0 %v744
        %v746 = vpop.xlane.xlu0 %745
        %v747 = vsel %vm533, %v348, 0.0
        %748 = vadd.xlane.f32.xlu0 %v747
        %v749 = vpop.xlane.xlu0 %748
        %v750 = vsel %vm533, %v349, 0.0
        %751 = vadd.xlane.f32.xlu0 %v750
        %v752 = vpop.xlane.xlu0 %751
        %v753 = vsel %vm533, %v350, 0.0
        %754 = vadd.xlane.f32.xlu0 %v753
        %v755 = vpop.xlane.xlu0 %754
        %v756 = vsel %vm533, %v351, 0.0
        %757 = vadd.xlane.f32.xlu0 %v756
        %v758 = vpop.xlane.xlu0 %757
        %v759 = vsel %vm533, %v352, 0.0
        %760 = vadd.xlane.f32.xlu0 %v759
        %v761 = vpop.xlane.xlu0 %760
        %v762 = vsel %vm533, %v353, 0.0
        %763 = vadd.xlane.f32.xlu0 %v762
        %v764 = vpop.xlane.xlu0 %763
        %v765 = vsel %vm533, %v354, 0.0
        %766 = vadd.xlane.f32.xlu0 %v765
        %v767 = vpop.xlane.xlu0 %766
        %v768 = vsel %vm533, %v355, 0.0
        %769 = vadd.xlane.f32.xlu0 %v768
        %v770 = vpop.xlane.xlu0 %769
        %v771 = vsel %vm533, %v356, 0.0
        %772 = vadd.xlane.f32.xlu0 %v771
        %v773 = vpop.xlane.xlu0 %772
        %v774 = vsel %vm533, %v357, 0.0
        %775 = vadd.xlane.f32.xlu0 %v774
        %v776 = vpop.xlane.xlu0 %775
        %v777 = vsel %vm533, %v358, 0.0
        %778 = vadd.xlane.f32.xlu0 %v777
        %v779 = vpop.xlane.xlu0 %778
        %v780 = vsel %vm533, %v359, 0.0
        %781 = vadd.xlane.f32.xlu0 %v780
        %v782 = vpop.xlane.xlu0 %781
        %v783 = vsel %vm533, %v360, 0.0
        %784 = vadd.xlane.f32.xlu0 %v783
        %v785 = vpop.xlane.xlu0 %784
        %v786 = vsel %vm533, %v361, 0.0
        %787 = vadd.xlane.f32.xlu0 %v786
        %v788 = vpop.xlane.xlu0 %787
        %v789 = vsel %vm533, %v362, 0.0
        %790 = vadd.xlane.f32.xlu0 %v789
        %v791 = vpop.xlane.xlu0 %790
        %v792 = vsel %vm533, %v363, 0.0
        %793 = vadd.xlane.f32.xlu0 %v792
        %v794 = vpop.xlane.xlu0 %793
        %v795 = vsel %vm533, %v364, 0.0
        %796 = vadd.xlane.f32.xlu0 %v795
        %v797 = vpop.xlane.xlu0 %796
        %v798 = vsel %vm533, %v365, 0.0
        %799 = vadd.xlane.f32.xlu0 %v798
        %v800 = vpop.xlane.xlu0 %799
        %v801 = vsel %vm533, %v366, 0.0
        %802 = vadd.xlane.f32.xlu0 %v801
        %v803 = vpop.xlane.xlu0 %802
        %v804 = vsel %vm533, %v367, 0.0
        %805 = vadd.xlane.f32.xlu0 %v804
        %v806 = vpop.xlane.xlu0 %805
        %v807 = vsel %vm533, %v368, 0.0
        %808 = vadd.xlane.f32.xlu0 %v807
        %v809 = vpop.xlane.xlu0 %808
        %v810 = vsel %vm533, %v369, 0.0
        %811 = vadd.xlane.f32.xlu0 %v810
        %v812 = vpop.xlane.xlu0 %811
        %v813 = vsel %vm533, %v370, 0.0
        %814 = vadd.xlane.f32.xlu0 %v813
        %v815 = vpop.xlane.xlu0 %814
        %v816 = vsel %vm533, %v371, 0.0
        %817 = vadd.xlane.f32.xlu0 %v816
        %v818 = vpop.xlane.xlu0 %817
        %v819 = vsel %vm533, %v372, 0.0
        %820 = vadd.xlane.f32.xlu0 %v819
        %v821 = vpop.xlane.xlu0 %820
        %v822 = vsel %vm533, %v373, 0.0
        %823 = vadd.xlane.f32.xlu0 %v822
        %v824 = vpop.xlane.xlu0 %823
        %v825 = vsel %vm533, %v374, 0.0
        %826 = vadd.xlane.f32.xlu0 %v825
        %v827 = vpop.xlane.xlu0 %826
        %v828 = vsel %vm533, %v375, 0.0
        %829 = vadd.xlane.f32.xlu0 %v828
        %v830 = vpop.xlane.xlu0 %829
        %v831 = vsel %vm533, %v376, 0.0
        %832 = vadd.xlane.f32.xlu0 %v831
        %v833 = vpop.xlane.xlu0 %832
        %v834 = vsel %vm533, %v377, 0.0
        %835 = vadd.xlane.f32.xlu0 %v834
        %v836 = vpop.xlane.xlu0 %835
        %v837 = vsel %vm533, %v378, 0.0
        %838 = vadd.xlane.f32.xlu0 %v837
        %v839 = vpop.xlane.xlu0 %838
        %v840 = vsel %vm533, %v379, 0.0
        %841 = vadd.xlane.f32.xlu0 %v840
        %v842 = vpop.xlane.xlu0 %841
        %v843 = vsel %vm533, %v380, 0.0
        %844 = vadd.xlane.f32.xlu0 %v843
        %v845 = vpop.xlane.xlu0 %844
        %v846 = vsel %vm533, %v381, 0.0
        %847 = vadd.xlane.f32.xlu0 %v846
        %v848 = vpop.xlane.xlu0 %847
        %v849 = vsel %vm533, %v382, 0.0
        %850 = vadd.xlane.f32.xlu0 %v849
        %v851 = vpop.xlane.xlu0 %850
        %v852 = vsel %vm533, %v383, 0.0
        %853 = vadd.xlane.f32.xlu0 %v852
        %v854 = vpop.xlane.xlu0 %853
        %v855 = vsel %vm533, %v384, 0.0
        %856 = vadd.xlane.f32.xlu0 %v855
        %v857 = vpop.xlane.xlu0 %856
        %v858 = vsel %vm533, %v385, 0.0
        %859 = vadd.xlane.f32.xlu0 %v858
        %v860 = vpop.xlane.xlu0 %859
        %v861 = vsel %vm533, %v386, 0.0
        %862 = vadd.xlane.f32.xlu0 %v861
        %v863 = vpop.xlane.xlu0 %862
        %v864 = vsel %vm533, %v387, 0.0
        %865 = vadd.xlane.f32.xlu0 %v864
        %v866 = vpop.xlane.xlu0 %865
        %v867 = vsel %vm533, %v388, 0.0
        %868 = vadd.xlane.f32.xlu0 %v867
        %v869 = vpop.xlane.xlu0 %868
        %v870 = vsel %vm533, %v389, 0.0
        %871 = vadd.xlane.f32.xlu0 %v870
        %v872 = vpop.xlane.xlu0 %871
        %v873 = vsel %vm533, %v390, 0.0
        %874 = vadd.xlane.f32.xlu0 %v873
        %v875 = vpop.xlane.xlu0 %874
        %v876 = vsel %vm533, %v391, 0.0
        %877 = vadd.xlane.f32.xlu0 %v876
        %v878 = vpop.xlane.xlu0 %877
        %v879 = vsel %vm533, %v392, 0.0
        %880 = vadd.xlane.f32.xlu0 %v879
        %v881 = vpop.xlane.xlu0 %880
        %v882 = vsel %vm533, %v393, 0.0
        %883 = vadd.xlane.f32.xlu0 %v882
        %v884 = vpop.xlane.xlu0 %883
        %v885 = vsel %vm533, %v394, 0.0
        %886 = vadd.xlane.f32.xlu0 %v885
        %v887 = vpop.xlane.xlu0 %886
        %v888 = vsel %vm533, %v395, 0.0
        %889 = vadd.xlane.f32.xlu0 %v888
        %v890 = vpop.xlane.xlu0 %889
        %v891 = vsel %vm533, %v396, 0.0
        %892 = vadd.xlane.f32.xlu0 %v891
        %v893 = vpop.xlane.xlu0 %892
        %v894 = vsel %vm533, %v397, 0.0
        %895 = vadd.xlane.f32.xlu0 %v894
        %v896 = vpop.xlane.xlu0 %895
        %v897 = vsel %vm533, %v398, 0.0
        %898 = vadd.xlane.f32.xlu0 %v897
        %v899 = vpop.xlane.xlu0 %898
        %v900 = vsel %vm533, %v399, 0.0
        %901 = vadd.xlane.f32.xlu0 %v900
        %v902 = vpop.xlane.xlu0 %901
        %v903 = vsel %vm533, %v400, 0.0
        %904 = vadd.xlane.f32.xlu0 %v903
        %v905 = vpop.xlane.xlu0 %904
        %v906 = vsel %vm533, %v401, 0.0
        %907 = vadd.xlane.f32.xlu0 %v906
        %v908 = vpop.xlane.xlu0 %907
        %v909 = vsel %vm533, %v402, 0.0
        %910 = vadd.xlane.f32.xlu0 %v909
        %v911 = vpop.xlane.xlu0 %910
        %v912 = vsel %vm533, %v403, 0.0
        %913 = vadd.xlane.f32.xlu0 %v912
        %v914 = vpop.xlane.xlu0 %913
        %v915 = vsel %vm533, %v404, 0.0
        %916 = vadd.xlane.f32.xlu0 %v915
        %v917 = vpop.xlane.xlu0 %916
        %v918 = vsel %vm533, %v405, 0.0
        %919 = vadd.xlane.f32.xlu0 %v918
        %v920 = vpop.xlane.xlu0 %919
        %v921 = vsel %vm533, %v406, 0.0
        %922 = vadd.xlane.f32.xlu0 %v921
        %v923 = vpop.xlane.xlu0 %922
        %v924 = vsel %vm533, %v407, 0.0
        %925 = vadd.xlane.f32.xlu0 %v924
        %v926 = vpop.xlane.xlu0 %925
        %v927 = vsel %vm533, %v408, 0.0
        %928 = vadd.xlane.f32.xlu0 %v927
        %v929 = vpop.xlane.xlu0 %928
        %v930 = vsel %vm533, %v409, 0.0
        %931 = vadd.xlane.f32.xlu0 %v930
        %v932 = vpop.xlane.xlu0 %931
        %v933 = vsel %vm533, %v410, 0.0
        %934 = vadd.xlane.f32.xlu0 %v933
        %v935 = vpop.xlane.xlu0 %934
        %v936 = vsel %vm533, %v411, 0.0
        %937 = vadd.xlane.f32.xlu0 %v936
        %v938 = vpop.xlane.xlu0 %937
        %v939 = vsel %vm533, %v412, 0.0
        %940 = vadd.xlane.f32.xlu0 %v939
        %v941 = vpop.xlane.xlu0 %940
        %v942 = vsel %vm533, %v413, 0.0
        %943 = vadd.xlane.f32.xlu0 %v942
        %v944 = vpop.xlane.xlu0 %943
        %v945 = vsel %vm533, %v414, 0.0
        %946 = vadd.xlane.f32.xlu0 %v945
        %v947 = vpop.xlane.xlu0 %946
        %v948 = vsel %vm533, %v415, 0.0
        %949 = vadd.xlane.f32.xlu0 %v948
        %v950 = vpop.xlane.xlu0 %949
        %v951 = vsel %vm533, %v416, 0.0
        %952 = vadd.xlane.f32.xlu0 %v951
        %v953 = vpop.xlane.xlu0 %952
        %v954 = vsel %vm533, %v417, 0.0
        %955 = vadd.xlane.f32.xlu0 %v954
        %v956 = vpop.xlane.xlu0 %955
        %v957 = vsel %vm533, %v418, 0.0
        %958 = vadd.xlane.f32.xlu0 %v957
        %v959 = vpop.xlane.xlu0 %958
        %v960 = vsel %vm533, %v419, 0.0
        %961 = vadd.xlane.f32.xlu0 %v960
        %v962 = vpop.xlane.xlu0 %961
        %v963 = vsel %vm533, %v420, 0.0
        %964 = vadd.xlane.f32.xlu0 %v963
        %v965 = vpop.xlane.xlu0 %964
        %v966 = vsel %vm533, %v421, 0.0
        %967 = vadd.xlane.f32.xlu0 %v966
        %v968 = vpop.xlane.xlu0 %967
        %v969 = vsel %vm533, %v422, 0.0
        %970 = vadd.xlane.f32.xlu0 %v969
        %v971 = vpop.xlane.xlu0 %970
        %v972 = vsel %vm533, %v423, 0.0
        %973 = vadd.xlane.f32.xlu0 %v972
        %v974 = vpop.xlane.xlu0 %973
        %v975 = vsel %vm533, %v424, 0.0
        %976 = vadd.xlane.f32.xlu0 %v975
        %v977 = vpop.xlane.xlu0 %976
        %v978 = vsel %vm533, %v425, 0.0
        %979 = vadd.xlane.f32.xlu0 %v978
        %v980 = vpop.xlane.xlu0 %979
        %v981 = vsel %vm533, %v426, 0.0
        %982 = vadd.xlane.f32.xlu0 %v981
        %v983 = vpop.xlane.xlu0 %982
        %v984 = vsel %vm533, %v427, 0.0
        %985 = vadd.xlane.f32.xlu0 %v984
        %v986 = vpop.xlane.xlu0 %985
        %v987 = vsel %vm533, %v428, 0.0
        %988 = vadd.xlane.f32.xlu0 %v987
        %v989 = vpop.xlane.xlu0 %988
        %v990 = vsel %vm533, %v429, 0.0
        %991 = vadd.xlane.f32.xlu0 %v990
        %v992 = vpop.xlane.xlu0 %991
        %v993 = vsel %vm533, %v430, 0.0
        %994 = vadd.xlane.f32.xlu0 %v993
        %v995 = vpop.xlane.xlu0 %994
        %v996 = vsel %vm533, %v431, 0.0
        %997 = vadd.xlane.f32.xlu0 %v996
        %v998 = vpop.xlane.xlu0 %997
        %v999 = vsel %vm533, %v432, 0.0
        %1000 = vadd.xlane.f32.xlu0 %v999
        %v1001 = vpop.xlane.xlu0 %1000
        %v1002 = vsel %vm533, %v433, 0.0
        %1003 = vadd.xlane.f32.xlu0 %v1002
        %v1004 = vpop.xlane.xlu0 %1003
        %v1005 = vsel %vm533, %v434, 0.0
        %1006 = vadd.xlane.f32.xlu0 %v1005
        %v1007 = vpop.xlane.xlu0 %1006
        %v1008 = vsel %vm533, %v435, 0.0
        %1009 = vadd.xlane.f32.xlu0 %v1008
        %v1010 = vpop.xlane.xlu0 %1009
        %v1011 = vsel %vm533, %v436, 0.0
        %1012 = vadd.xlane.f32.xlu0 %v1011
        %v1013 = vpop.xlane.xlu0 %1012
        %v1014 = vsel %vm533, %v437, 0.0
        %1015 = vadd.xlane.f32.xlu0 %v1014
        %v1016 = vpop.xlane.xlu0 %1015
        %v1017 = vsel %vm533, %v438, 0.0
        %1018 = vadd.xlane.f32.xlu0 %v1017
        %v1019 = vpop.xlane.xlu0 %1018
        %v1020 = vsel %vm533, %v439, 0.0
        %1021 = vadd.xlane.f32.xlu0 %v1020
        %v1022 = vpop.xlane.xlu0 %1021
        %v1023 = vsel %vm533, %v440, 0.0
        %1024 = vadd.xlane.f32.xlu0 %v1023
        %v1025 = vpop.xlane.xlu0 %1024
        %v1026 = vsel %vm533, %v441, 0.0
        %1027 = vadd.xlane.f32.xlu0 %v1026
        %v1028 = vpop.xlane.xlu0 %1027
        %v1029 = vsel %vm533, %v442, 0.0
        %1030 = vadd.xlane.f32.xlu0 %v1029
        %v1031 = vpop.xlane.xlu0 %1030
        %v1032 = vsel %vm533, %v443, 0.0
        %1033 = vadd.xlane.f32.xlu0 %v1032
        %v1034 = vpop.xlane.xlu0 %1033
        %v1035 = vsel %vm533, %v444, 0.0
        %1036 = vadd.xlane.f32.xlu0 %v1035
        %v1037 = vpop.xlane.xlu0 %1036
        %v1038 = vsel %vm533, %v445, 0.0
        %1039 = vadd.xlane.f32.xlu0 %v1038
        %v1040 = vpop.xlane.xlu0 %1039
        %v1041 = vsel %vm533, %v446, 0.0
        %1042 = vadd.xlane.f32.xlu0 %v1041
        %v1043 = vpop.xlane.xlu0 %1042
        %v1044 = vsel %vm533, %v447, 0.0
        %1045 = vadd.xlane.f32.xlu0 %v1044
        %v1046 = vpop.xlane.xlu0 %1045
        %v1047 = vsel %vm533, %v448, 0.0
        %1048 = vadd.xlane.f32.xlu0 %v1047
        %v1049 = vpop.xlane.xlu0 %1048
        %v1050 = vsel %vm533, %v449, 0.0
        %1051 = vadd.xlane.f32.xlu0 %v1050
        %v1052 = vpop.xlane.xlu0 %1051
        %v1053 = vsel %vm533, %v450, 0.0
        %1054 = vadd.xlane.f32.xlu0 %v1053
        %v1055 = vpop.xlane.xlu0 %1054
        %v1056 = vsel %vm533, %v451, 0.0
        %1057 = vadd.xlane.f32.xlu0 %v1056
        %v1058 = vpop.xlane.xlu0 %1057
        %v1059 = vsel %vm533, %v452, 0.0
        %1060 = vadd.xlane.f32.xlu0 %v1059
        %v1061 = vpop.xlane.xlu0 %1060
        %v1062 = vsel %vm533, %v453, 0.0
        %1063 = vadd.xlane.f32.xlu0 %v1062
        %v1064 = vpop.xlane.xlu0 %1063
        %v1065 = vsel %vm533, %v454, 0.0
        %1066 = vadd.xlane.f32.xlu0 %v1065
        %v1067 = vpop.xlane.xlu0 %1066
        %v1068 = vsel %vm533, %v455, 0.0
        %1069 = vadd.xlane.f32.xlu0 %v1068
        %v1070 = vpop.xlane.xlu0 %1069
        %v1071 = vsel %vm533, %v456, 0.0
        %1072 = vadd.xlane.f32.xlu0 %v1071
        %v1073 = vpop.xlane.xlu0 %1072
        %v1074 = vsel %vm533, %v457, 0.0
        %1075 = vadd.xlane.f32.xlu0 %v1074
        %v1076 = vpop.xlane.xlu0 %1075
        %v1077 = vsel %vm533, %v458, 0.0
        %1078 = vadd.xlane.f32.xlu0 %v1077
        %v1079 = vpop.xlane.xlu0 %1078
        %v1080 = vsel %vm533, %v459, 0.0
        %1081 = vadd.xlane.f32.xlu0 %v1080
        %v1082 = vpop.xlane.xlu0 %1081
        %v1083 = vsel %vm533, %v460, 0.0
        %1084 = vadd.xlane.f32.xlu0 %v1083
        %v1085 = vpop.xlane.xlu0 %1084
        %v1086 = vsel %vm533, %v461, 0.0
        %1087 = vadd.xlane.f32.xlu0 %v1086
        %v1088 = vpop.xlane.xlu0 %1087
        %v1089 = vsel %vm533, %v462, 0.0
        %1090 = vadd.xlane.f32.xlu0 %v1089
        %v1091 = vpop.xlane.xlu0 %1090
        %v1092 = vsel %vm533, %v463, 0.0
        %1093 = vadd.xlane.f32.xlu0 %v1092
        %v1094 = vpop.xlane.xlu0 %1093
        %v1095 = vsel %vm533, %v464, 0.0
        %1096 = vadd.xlane.f32.xlu0 %v1095
        %v1097 = vpop.xlane.xlu0 %1096
        %v1098 = vsel %vm533, %v465, 0.0
        %1099 = vadd.xlane.f32.xlu0 %v1098
        %v1100 = vpop.xlane.xlu0 %1099
        %v1101 = vsel %vm533, %v466, 0.0
        %1102 = vadd.xlane.f32.xlu0 %v1101
        %v1103 = vpop.xlane.xlu0 %1102
        %v1104 = vsel %vm533, %v467, 0.0
        %1105 = vadd.xlane.f32.xlu0 %v1104
        %v1106 = vpop.xlane.xlu0 %1105
        %v1107 = vsel %vm533, %v468, 0.0
        %1108 = vadd.xlane.f32.xlu0 %v1107
        %v1109 = vpop.xlane.xlu0 %1108
        %v1110 = vsel %vm533, %v469, 0.0
        %1111 = vadd.xlane.f32.xlu0 %v1110
        %v1112 = vpop.xlane.xlu0 %1111
        %v1113 = vsel %vm533, %v470, 0.0
        %1114 = vadd.xlane.f32.xlu0 %v1113
        %v1115 = vpop.xlane.xlu0 %1114
        %v1116 = vsel %vm533, %v471, 0.0
        %1117 = vadd.xlane.f32.xlu0 %v1116
        %v1118 = vpop.xlane.xlu0 %1117
        %v1119 = vsel %vm533, %v472, 0.0
        %1120 = vadd.xlane.f32.xlu0 %v1119
        %v1121 = vpop.xlane.xlu0 %1120
        %v1122 = vsel %vm533, %v473, 0.0
        %1123 = vadd.xlane.f32.xlu0 %v1122
        %v1124 = vpop.xlane.xlu0 %1123
        %v1125 = vsel %vm533, %v474, 0.0
        %1126 = vadd.xlane.f32.xlu0 %v1125
        %v1127 = vpop.xlane.xlu0 %1126
        %v1128 = vsel %vm533, %v475, 0.0
        %1129 = vadd.xlane.f32.xlu0 %v1128
        %v1130 = vpop.xlane.xlu0 %1129
        %v1131 = vsel %vm533, %v476, 0.0
        %1132 = vadd.xlane.f32.xlu0 %v1131
        %v1133 = vpop.xlane.xlu0 %1132
        %v1134 = vsel %vm533, %v477, 0.0
        %1135 = vadd.xlane.f32.xlu0 %v1134
        %v1136 = vpop.xlane.xlu0 %1135
        %v1137 = vsel %vm533, %v478, 0.0
        %1138 = vadd.xlane.f32.xlu0 %v1137
        %v1139 = vpop.xlane.xlu0 %1138
        %v1140 = vsel %vm533, %v479, 0.0
        %1141 = vadd.xlane.f32.xlu0 %v1140
        %v1142 = vpop.xlane.xlu0 %1141
        %v1143 = vsel %vm533, %v480, 0.0
        %1144 = vadd.xlane.f32.xlu0 %v1143
        %v1145 = vpop.xlane.xlu0 %1144
        %v1146 = vsel %vm533, %v481, 0.0
        %1147 = vadd.xlane.f32.xlu0 %v1146
        %v1148 = vpop.xlane.xlu0 %1147
        %v1149 = vsel %vm533, %v482, 0.0
        %1150 = vadd.xlane.f32.xlu0 %v1149
        %v1151 = vpop.xlane.xlu0 %1150
        %v1152 = vsel %vm533, %v483, 0.0
        %1153 = vadd.xlane.f32.xlu0 %v1152
        %v1154 = vpop.xlane.xlu0 %1153
        %v1155 = vsel %vm533, %v484, 0.0
        %1156 = vadd.xlane.f32.xlu0 %v1155
        %v1157 = vpop.xlane.xlu0 %1156
        %v1158 = vsel %vm533, %v485, 0.0
        %1159 = vadd.xlane.f32.xlu0 %v1158
        %v1160 = vpop.xlane.xlu0 %1159
        %v1161 = vsel %vm533, %v486, 0.0
        %1162 = vadd.xlane.f32.xlu0 %v1161
        %v1163 = vpop.xlane.xlu0 %1162
        %v1164 = vsel %vm533, %v487, 0.0
        %1165 = vadd.xlane.f32.xlu0 %v1164
        %v1166 = vpop.xlane.xlu0 %1165
        %v1167 = vsel %vm533, %v488, 0.0
        %1168 = vadd.xlane.f32.xlu0 %v1167
        %v1169 = vpop.xlane.xlu0 %1168
        %v1170 = vsel %vm533, %v489, 0.0
        %1171 = vadd.xlane.f32.xlu0 %v1170
        %v1172 = vpop.xlane.xlu0 %1171
        %v1173 = vsel %vm533, %v490, 0.0
        %1174 = vadd.xlane.f32.xlu0 %v1173
        %v1175 = vpop.xlane.xlu0 %1174
        %v1176 = vsel %vm533, %v491, 0.0
        %1177 = vadd.xlane.f32.xlu0 %v1176
        %v1178 = vpop.xlane.xlu0 %1177
        %v1179 = vsel %vm533, %v492, 0.0
        %1180 = vadd.xlane.f32.xlu0 %v1179
        %v1181 = vpop.xlane.xlu0 %1180
        %v1182 = vsel %vm533, %v493, 0.0
        %1183 = vadd.xlane.f32.xlu0 %v1182
        %v1184 = vpop.xlane.xlu0 %1183
        %v1185 = vsel %vm533, %v494, 0.0
        %1186 = vadd.xlane.f32.xlu0 %v1185
        %v1187 = vpop.xlane.xlu0 %1186
        %v1188 = vsel %vm533, %v495, 0.0
        %1189 = vadd.xlane.f32.xlu0 %v1188
        %v1190 = vpop.xlane.xlu0 %1189
        %v1191 = vsel %vm533, %v496, 0.0
        %1192 = vadd.xlane.f32.xlu0 %v1191
        %v1193 = vpop.xlane.xlu0 %1192
        %v1194 = vsel %vm533, %v497, 0.0
        %1195 = vadd.xlane.f32.xlu0 %v1194
        %v1196 = vpop.xlane.xlu0 %1195
        %v1197 = vsel %vm533, %v498, 0.0
        %1198 = vadd.xlane.f32.xlu0 %v1197
        %v1199 = vpop.xlane.xlu0 %1198
        %v1200 = vsel %vm533, %v499, 0.0
        %1201 = vadd.xlane.f32.xlu0 %v1200
        %v1202 = vpop.xlane.xlu0 %1201
        %v1203 = vsel %vm533, %v500, 0.0
        %1204 = vadd.xlane.f32.xlu0 %v1203
        %v1205 = vpop.xlane.xlu0 %1204
        %v1206 = vsel %vm533, %v501, 0.0
        %1207 = vadd.xlane.f32.xlu0 %v1206
        %v1208 = vpop.xlane.xlu0 %1207
        %v1209 = vsel %vm533, %v502, 0.0
        %1210 = vadd.xlane.f32.xlu0 %v1209
        %v1211 = vpop.xlane.xlu0 %1210
        %v1212 = vsel %vm533, %v503, 0.0
        %1213 = vadd.xlane.f32.xlu0 %v1212
        %v1214 = vpop.xlane.xlu0 %1213
        %v1215 = vsel %vm533, %v504, 0.0
        %1216 = vadd.xlane.f32.xlu0 %v1215
        %v1217 = vpop.xlane.xlu0 %1216
        %v1218 = vsel %vm533, %v505, 0.0
        %1219 = vadd.xlane.f32.xlu0 %v1218
        %v1220 = vpop.xlane.xlu0 %1219
        %v1221 = vsel %vm533, %v506, 0.0
        %1222 = vadd.xlane.f32.xlu0 %v1221
        %v1223 = vpop.xlane.xlu0 %1222
        %v1224 = vsel %vm533, %v507, 0.0
        %1225 = vadd.xlane.f32.xlu0 %v1224
        %v1226 = vpop.xlane.xlu0 %1225
        %v1227 = vsel %vm533, %v508, 0.0
        %1228 = vadd.xlane.f32.xlu0 %v1227
        %v1229 = vpop.xlane.xlu0 %1228
        %v1230 = vsel %vm533, %v509, 0.0
        %1231 = vadd.xlane.f32.xlu0 %v1230
        %v1232 = vpop.xlane.xlu0 %1231
        %v1233 = vsel %vm533, %v510, 0.0
        %1234 = vadd.xlane.f32.xlu0 %v1233
        %v1235 = vpop.xlane.xlu0 %1234
        %v1236 = vsel %vm533, %v511, 0.0
        %1237 = vadd.xlane.f32.xlu0 %v1236
        %v1238 = vpop.xlane.xlu0 %1237
        %v1239 = vsel %vm533, %v512, 0.0
        %1240 = vadd.xlane.f32.xlu0 %v1239
        %v1241 = vpop.xlane.xlu0 %1240
        %v1242 = vsel %vm533, %v513, 0.0
        %1243 = vadd.xlane.f32.xlu0 %v1242
        %v1244 = vpop.xlane.xlu0 %1243
        %v1245 = vsel %vm533, %v514, 0.0
        %1246 = vadd.xlane.f32.xlu0 %v1245
        %v1247 = vpop.xlane.xlu0 %1246
        %v1248 = vsel %vm533, %v515, 0.0
        %1249 = vadd.xlane.f32.xlu0 %v1248
        %v1250 = vpop.xlane.xlu0 %1249
        %v1251 = vsel %vm533, %v516, 0.0
        %1252 = vadd.xlane.f32.xlu0 %v1251
        %v1253 = vpop.xlane.xlu0 %1252
        %v1254 = vsel %vm533, %v517, 0.0
        %1255 = vadd.xlane.f32.xlu0 %v1254
        %v1256 = vpop.xlane.xlu0 %1255
        %v1257 = vsel %vm533, %v518, 0.0
        %1258 = vadd.xlane.f32.xlu0 %v1257
        %v1259 = vpop.xlane.xlu0 %1258
        %v1260 = vsel %vm533, %v519, 0.0
        %1261 = vadd.xlane.f32.xlu0 %v1260
        %v1262 = vpop.xlane.xlu0 %1261
        %v1263 = vsel %vm533, %v520, 0.0
        %1264 = vadd.xlane.f32.xlu0 %v1263
        %v1265 = vpop.xlane.xlu0 %1264
        %v1266 = vsel %vm533, %v521, 0.0
        %1267 = vadd.xlane.f32.xlu0 %v1266
        %v1268 = vpop.xlane.xlu0 %1267
        %v1269 = vsel %vm533, %v522, 0.0
        %1270 = vadd.xlane.f32.xlu0 %v1269
        %v1271 = vpop.xlane.xlu0 %1270
        %v1272 = vsel %vm533, %v523, 0.0
        %1273 = vadd.xlane.f32.xlu0 %v1272
        %v1274 = vpop.xlane.xlu0 %1273
        %v1275 = vsel %vm533, %v524, 0.0
        %1276 = vadd.xlane.f32.xlu0 %v1275
        %v1277 = vpop.xlane.xlu0 %1276
        %v1278 = vsel %vm533, %v525, 0.0
        %1279 = vadd.xlane.f32.xlu0 %v1278
        %v1280 = vpop.xlane.xlu0 %1279
        %v1281 = vsel %vm533, %v526, 0.0
        %1282 = vadd.xlane.f32.xlu0 %v1281
        %v1283 = vpop.xlane.xlu0 %1282
        %v1284 = vsel %vm533, %v527, 0.0
        %1285 = vadd.xlane.f32.xlu0 %v1284
        %v1286 = vpop.xlane.xlu0 %1285
        %v1287 = vsel %vm533, %v528, 0.0
        %1288 = vadd.xlane.f32.xlu0 %v1287
        %v1289 = vpop.xlane.xlu0 %1288
        %v1290 = vsel %vm533, %v529, 0.0
        %1291 = vadd.xlane.f32.xlu0 %v1290
        %v1292 = vpop.xlane.xlu0 %1291
        %v1293 = vsel %vm533, %v530, 0.0
        %1294 = vadd.xlane.f32.xlu0 %v1293
        %v1295 = vpop.xlane.xlu0 %1294
        %v1296 = vsel %vm533, %v531, 0.0
        %1297 = vadd.xlane.f32.xlu0 %v1296
        %v1298 = vpop.xlane.xlu0 %1297
        %v1299 = vsel %vm533, %v532, 0.0
        %1300 = vadd.xlane.f32.xlu0 %v1299
        %v1301 = vpop.xlane.xlu0 %1300
        %v1302 = vmul.f32 %v536, 0.020408163
        %v1303 = vmul.f32 %v539, 0.020408163
        %v1304 = vmul.f32 %v542, 0.020408163
        %v1305 = vmul.f32 %v545, 0.020408163
        %v1306 = vmul.f32 %v548, 0.020408163
        %v1307 = vmul.f32 %v551, 0.020408163
        %v1308 = vmul.f32 %v554, 0.020408163
        %v1309 = vmul.f32 %v557, 0.020408163
        %v1310 = vmul.f32 %v560, 0.020408163
        %v1311 = vmul.f32 %v563, 0.020408163
        %v1312 = vmul.f32 %v566, 0.020408163
        %v1313 = vmul.f32 %v569, 0.020408163
        %v1314 = vmul.f32 %v572, 0.020408163
        %v1315 = vmul.f32 %v575, 0.020408163
        %v1316 = vmul.f32 %v578, 0.020408163
        %v1317 = vmul.f32 %v581, 0.020408163
        %v1318 = vmul.f32 %v584, 0.020408163
        %v1319 = vmul.f32 %v587, 0.020408163
        %v1320 = vmul.f32 %v590, 0.020408163
        %v1321 = vmul.f32 %v593, 0.020408163
        %v1322 = vmul.f32 %v596, 0.020408163
        %v1323 = vmul.f32 %v599, 0.020408163
        %v1324 = vmul.f32 %v602, 0.020408163
        %v1325 = vmul.f32 %v605, 0.020408163
        %v1326 = vmul.f32 %v608, 0.020408163
        %v1327 = vmul.f32 %v611, 0.020408163
        %v1328 = vmul.f32 %v614, 0.020408163
        %v1329 = vmul.f32 %v617, 0.020408163
        %v1330 = vmul.f32 %v620, 0.020408163
        %v1331 = vmul.f32 %v623, 0.020408163
        %v1332 = vmul.f32 %v626, 0.020408163
        %v1333 = vmul.f32 %v629, 0.020408163
        %v1334 = vmul.f32 %v632, 0.020408163
        %v1335 = vmul.f32 %v635, 0.020408163
        %v1336 = vmul.f32 %v638, 0.020408163
        %v1337 = vmul.f32 %v641, 0.020408163
        %v1338 = vmul.f32 %v644, 0.020408163
        %v1339 = vmul.f32 %v647, 0.020408163
        %v1340 = vmul.f32 %v650, 0.020408163
        %v1341 = vmul.f32 %v653, 0.020408163
        %v1342 = vmul.f32 %v656, 0.020408163
        %v1343 = vmul.f32 %v659, 0.020408163
        %v1344 = vmul.f32 %v662, 0.020408163
        %v1345 = vmul.f32 %v665, 0.020408163
        %v1346 = vmul.f32 %v668, 0.020408163
        %v1347 = vmul.f32 %v671, 0.020408163
        %v1348 = vmul.f32 %v674, 0.020408163
        %v1349 = vmul.f32 %v677, 0.020408163
        %v1350 = vmul.f32 %v680, 0.020408163
        %v1351 = vmul.f32 %v683, 0.020408163
        %v1352 = vmul.f32 %v686, 0.020408163
        %v1353 = vmul.f32 %v689, 0.020408163
        %v1354 = vmul.f32 %v692, 0.020408163
        %v1355 = vmul.f32 %v695, 0.020408163
        %v1356 = vmul.f32 %v698, 0.020408163
        %v1357 = vmul.f32 %v701, 0.020408163
        %v1358 = vmul.f32 %v704, 0.020408163
        %v1359 = vmul.f32 %v707, 0.020408163
        %v1360 = vmul.f32 %v710, 0.020408163
        %v1361 = vmul.f32 %v713, 0.020408163
        %v1362 = vmul.f32 %v716, 0.020408163
        %v1363 = vmul.f32 %v719, 0.020408163
        %v1364 = vmul.f32 %v722, 0.020408163
        %v1365 = vmul.f32 %v725, 0.020408163
        %v1366 = vmul.f32 %v728, 0.020408163
        %v1367 = vmul.f32 %v731, 0.020408163
        %v1368 = vmul.f32 %v734, 0.020408163
        %v1369 = vmul.f32 %v737, 0.020408163
        %v1370 = vmul.f32 %v740, 0.020408163
        %v1371 = vmul.f32 %v743, 0.020408163
        %v1372 = vmul.f32 %v746, 0.020408163
        %v1373 = vmul.f32 %v749, 0.020408163
        %v1374 = vmul.f32 %v752, 0.020408163
        %v1375 = vmul.f32 %v755, 0.020408163
        %v1376 = vmul.f32 %v758, 0.020408163
        %v1377 = vmul.f32 %v761, 0.020408163
        %v1378 = vmul.f32 %v764, 0.020408163
        %v1379 = vmul.f32 %v767, 0.020408163
        %v1380 = vmul.f32 %v770, 0.020408163
        %v1381 = vmul.f32 %v773, 0.020408163
        %v1382 = vmul.f32 %v776, 0.020408163
        %v1383 = vmul.f32 %v779, 0.020408163
        %v1384 = vmul.f32 %v782, 0.020408163
        %v1385 = vmul.f32 %v785, 0.020408163
        %v1386 = vmul.f32 %v788, 0.020408163
        %v1387 = vmul.f32 %v791, 0.020408163
        %v1388 = vmul.f32 %v794, 0.020408163
        %v1389 = vmul.f32 %v797, 0.020408163
        %v1390 = vmul.f32 %v800, 0.020408163
        %v1391 = vmul.f32 %v803, 0.020408163
        %v1392 = vmul.f32 %v806, 0.020408163
        %v1393 = vmul.f32 %v809, 0.020408163
        %v1394 = vmul.f32 %v812, 0.020408163
        %v1395 = vmul.f32 %v815, 0.020408163
        %v1396 = vmul.f32 %v818, 0.020408163
        %v1397 = vmul.f32 %v821, 0.020408163
        %v1398 = vmul.f32 %v824, 0.020408163
        %v1399 = vmul.f32 %v827, 0.020408163
        %v1400 = vmul.f32 %v830, 0.020408163
        %v1401 = vmul.f32 %v833, 0.020408163
        %v1402 = vmul.f32 %v836, 0.020408163
        %v1403 = vmul.f32 %v839, 0.020408163
        %v1404 = vmul.f32 %v842, 0.020408163
        %v1405 = vmul.f32 %v845, 0.020408163
        %v1406 = vmul.f32 %v848, 0.020408163
        %v1407 = vmul.f32 %v851, 0.020408163
        %v1408 = vmul.f32 %v854, 0.020408163
        %v1409 = vmul.f32 %v857, 0.020408163
        %v1410 = vmul.f32 %v860, 0.020408163
        %v1411 = vmul.f32 %v863, 0.020408163
        %v1412 = vmul.f32 %v866, 0.020408163
        %v1413 = vmul.f32 %v869, 0.020408163
        %v1414 = vmul.f32 %v872, 0.020408163
        %v1415 = vmul.f32 %v875, 0.020408163
        %v1416 = vmul.f32 %v878, 0.020408163
        %v1417 = vmul.f32 %v881, 0.020408163
        %v1418 = vmul.f32 %v884, 0.020408163
        %v1419 = vmul.f32 %v887, 0.020408163
        %v1420 = vmul.f32 %v890, 0.020408163
        %v1421 = vmul.f32 %v893, 0.020408163
        %v1422 = vmul.f32 %v896, 0.020408163
        %v1423 = vmul.f32 %v899, 0.020408163
        %v1424 = vmul.f32 %v902, 0.020408163
        %v1425 = vmul.f32 %v905, 0.020408163
        %v1426 = vmul.f32 %v908, 0.020408163
        %v1427 = vmul.f32 %v911, 0.020408163
        %v1428 = vmul.f32 %v914, 0.020408163
        %v1429 = vmul.f32 %v917, 0.020408163
        %v1430 = vmul.f32 %v920, 0.020408163
        %v1431 = vmul.f32 %v923, 0.020408163
        %v1432 = vmul.f32 %v926, 0.020408163
        %v1433 = vmul.f32 %v929, 0.020408163
        %v1434 = vmul.f32 %v932, 0.020408163
        %v1435 = vmul.f32 %v935, 0.020408163
        %v1436 = vmul.f32 %v938, 0.020408163
        %v1437 = vmul.f32 %v941, 0.020408163
        %v1438 = vmul.f32 %v944, 0.020408163
        %v1439 = vmul.f32 %v947, 0.020408163
        %v1440 = vmul.f32 %v950, 0.020408163
        %v1441 = vmul.f32 %v953, 0.020408163
        %v1442 = vmul.f32 %v956, 0.020408163
        %v1443 = vmul.f32 %v959, 0.020408163
        %v1444 = vmul.f32 %v962, 0.020408163
        %v1445 = vmul.f32 %v965, 0.020408163
        %v1446 = vmul.f32 %v968, 0.020408163
        %v1447 = vmul.f32 %v971, 0.020408163
        %v1448 = vmul.f32 %v974, 0.020408163
        %v1449 = vmul.f32 %v977, 0.020408163
        %v1450 = vmul.f32 %v980, 0.020408163
        %v1451 = vmul.f32 %v983, 0.020408163
        %v1452 = vmul.f32 %v986, 0.020408163
        %v1453 = vmul.f32 %v989, 0.020408163
        %v1454 = vmul.f32 %v992, 0.020408163
        %v1455 = vmul.f32 %v995, 0.020408163
        %v1456 = vmul.f32 %v998, 0.020408163
        %v1457 = vmul.f32 %v1001, 0.020408163
        %v1458 = vmul.f32 %v1004, 0.020408163
        %v1459 = vmul.f32 %v1007, 0.020408163
        %v1460 = vmul.f32 %v1010, 0.020408163
        %v1461 = vmul.f32 %v1013, 0.020408163
        %v1462 = vmul.f32 %v1016, 0.020408163
        %v1463 = vmul.f32 %v1019, 0.020408163
        %v1464 = vmul.f32 %v1022, 0.020408163
        %v1465 = vmul.f32 %v1025, 0.020408163
        %v1466 = vmul.f32 %v1028, 0.020408163
        %v1467 = vmul.f32 %v1031, 0.020408163
        %v1468 = vmul.f32 %v1034, 0.020408163
        %v1469 = vmul.f32 %v1037, 0.020408163
        %v1470 = vmul.f32 %v1040, 0.020408163
        %v1471 = vmul.f32 %v1043, 0.020408163
        %v1472 = vmul.f32 %v1046, 0.020408163
        %v1473 = vmul.f32 %v1049, 0.020408163
        %v1474 = vmul.f32 %v1052, 0.020408163
        %v1475 = vmul.f32 %v1055, 0.020408163
        %v1476 = vmul.f32 %v1058, 0.020408163
        %v1477 = vmul.f32 %v1061, 0.020408163
        %v1478 = vmul.f32 %v1064, 0.020408163
        %v1479 = vmul.f32 %v1067, 0.020408163
        %v1480 = vmul.f32 %v1070, 0.020408163
        %v1481 = vmul.f32 %v1073, 0.020408163
        %v1482 = vmul.f32 %v1076, 0.020408163
        %v1483 = vmul.f32 %v1079, 0.020408163
        %v1484 = vmul.f32 %v1082, 0.020408163
        %v1485 = vmul.f32 %v1085, 0.020408163
        %v1486 = vmul.f32 %v1088, 0.020408163
        %v1487 = vmul.f32 %v1091, 0.020408163
        %v1488 = vmul.f32 %v1094, 0.020408163
        %v1489 = vmul.f32 %v1097, 0.020408163
        %v1490 = vmul.f32 %v1100, 0.020408163
        %v1491 = vmul.f32 %v1103, 0.020408163
        %v1492 = vmul.f32 %v1106, 0.020408163
        %v1493 = vmul.f32 %v1109, 0.020408163
        %v1494 = vmul.f32 %v1112, 0.020408163
        %v1495 = vmul.f32 %v1115, 0.020408163
        %v1496 = vmul.f32 %v1118, 0.020408163
        %v1497 = vmul.f32 %v1121, 0.020408163
        %v1498 = vmul.f32 %v1124, 0.020408163
        %v1499 = vmul.f32 %v1127, 0.020408163
        %v1500 = vmul.f32 %v1130, 0.020408163
        %v1501 = vmul.f32 %v1133, 0.020408163
        %v1502 = vmul.f32 %v1136, 0.020408163
        %v1503 = vmul.f32 %v1139, 0.020408163
        %v1504 = vmul.f32 %v1142, 0.020408163
        %v1505 = vmul.f32 %v1145, 0.020408163
        %v1506 = vmul.f32 %v1148, 0.020408163
        %v1507 = vmul.f32 %v1151, 0.020408163
        %v1508 = vmul.f32 %v1154, 0.020408163
        %v1509 = vmul.f32 %v1157, 0.020408163
        %v1510 = vmul.f32 %v1160, 0.020408163
        %v1511 = vmul.f32 %v1163, 0.020408163
        %v1512 = vmul.f32 %v1166, 0.020408163
        %v1513 = vmul.f32 %v1169, 0.020408163
        %v1514 = vmul.f32 %v1172, 0.020408163
        %v1515 = vmul.f32 %v1175, 0.020408163
        %v1516 = vmul.f32 %v1178, 0.020408163
        %v1517 = vmul.f32 %v1181, 0.020408163
        %v1518 = vmul.f32 %v1184, 0.020408163
        %v1519 = vmul.f32 %v1187, 0.020408163
        %v1520 = vmul.f32 %v1190, 0.020408163
        %v1521 = vmul.f32 %v1193, 0.020408163
        %v1522 = vmul.f32 %v1196, 0.020408163
        %v1523 = vmul.f32 %v1199, 0.020408163
        %v1524 = vmul.f32 %v1202, 0.020408163
        %v1525 = vmul.f32 %v1205, 0.020408163
        %v1526 = vmul.f32 %v1208, 0.020408163
        %v1527 = vmul.f32 %v1211, 0.020408163
        %v1528 = vmul.f32 %v1214, 0.020408163
        %v1529 = vmul.f32 %v1217, 0.020408163
        %v1530 = vmul.f32 %v1220, 0.020408163
        %v1531 = vmul.f32 %v1223, 0.020408163
        %v1532 = vmul.f32 %v1226, 0.020408163
        %v1533 = vmul.f32 %v1229, 0.020408163
        %v1534 = vmul.f32 %v1232, 0.020408163
        %v1535 = vmul.f32 %v1235, 0.020408163
        %v1536 = vmul.f32 %v1238, 0.020408163
        %v1537 = vmul.f32 %v1241, 0.020408163
        %v1538 = vmul.f32 %v1244, 0.020408163
        %v1539 = vmul.f32 %v1247, 0.020408163
        %v1540 = vmul.f32 %v1250, 0.020408163
        %v1541 = vmul.f32 %v1253, 0.020408163
        %v1542 = vmul.f32 %v1256, 0.020408163
        %v1543 = vmul.f32 %v1259, 0.020408163
        %v1544 = vmul.f32 %v1262, 0.020408163
        %v1545 = vmul.f32 %v1265, 0.020408163
        %v1546 = vmul.f32 %v1268, 0.020408163
        %v1547 = vmul.f32 %v1271, 0.020408163
        %v1548 = vmul.f32 %v1274, 0.020408163
        %v1549 = vmul.f32 %v1277, 0.020408163
        %v1550 = vmul.f32 %v1280, 0.020408163
        %v1551 = vmul.f32 %v1283, 0.020408163
        %v1552 = vmul.f32 %v1286, 0.020408163
        %v1553 = vmul.f32 %v1289, 0.020408163
        %v1554 = vmul.f32 %v1292, 0.020408163
        %v1555 = vmul.f32 %v1295, 0.020408163
        %v1556 = vmul.f32 %v1298, 0.020408163
        %v1557 = vmul.f32 %v1301, 0.020408163
        %v1558 = vld [vmem:[#allocation2] sm:$0x1]
        %v1559 = vld [vmem:[%s270] sm:$0xff]
        %v1560 = vld [vmem:[%s270 + $0x8] sm:$0xff]
        %v1561 = vld [vmem:[%s270 + $0x10] sm:$0xff]
        %v1562 = vld [vmem:[%s270 + $0x18] sm:$0xff]
        %v1563 = vld [vmem:[%s270 + $0x20] sm:$0xff]
        %v1564 = vld [vmem:[%s270 + $0x28] sm:$0xff]
        %v1565 = vld [vmem:[%s270 + $0x30] sm:$0xff]
        %v1566 = vld [vmem:[%s270 + $0x38] sm:$0xff]
        %v1567 = vld [vmem:[%s270 + $0x40] sm:$0xff]
        %v1568 = vld [vmem:[%s270 + $0x48] sm:$0xff]
        %v1569 = vld [vmem:[%s270 + $0x50] sm:$0xff]
        %v1570 = vld [vmem:[%s270 + $0x58] sm:$0xff]
        %v1571 = vld [vmem:[%s270 + $0x60] sm:$0xff]
        %v1572 = vld [vmem:[%s270 + $0x68] sm:$0xff]
        %v1573 = vld [vmem:[%s270 + $0x70] sm:$0xff]
        %v1574 = vld [vmem:[%s270 + $0x78] sm:$0xff]
        %v1575 = vld [vmem:[%s270 + $0x80] sm:$0xff]
        %v1576 = vld [vmem:[%s270 + $0x88] sm:$0xff]
        %v1577 = vld [vmem:[%s270 + $0x90] sm:$0xff]
        %v1578 = vld [vmem:[%s270 + $0x98] sm:$0xff]
        %v1579 = vld [vmem:[%s270 + $0xa0] sm:$0xff]
        %v1580 = vld [vmem:[%s270 + $0xa8] sm:$0xff]
        %v1581 = vld [vmem:[%s270 + $0xb0] sm:$0xff]
        %v1582 = vld [vmem:[%s270 + $0xb8] sm:$0xff]
        %v1583 = vld [vmem:[%s270 + $0xc0] sm:$0xff]
        %v1584 = vld [vmem:[%s270 + $0xc8] sm:$0xff]
        %v1585 = vld [vmem:[%s270 + $0xd0] sm:$0xff]
        %v1586 = vld [vmem:[%s270 + $0xd8] sm:$0xff]
        %v1587 = vld [vmem:[%s270 + $0xe0] sm:$0xff]
        %v1588 = vld [vmem:[%s270 + $0xe8] sm:$0xff]
        %v1589 = vld [vmem:[%s270 + $0xf0] sm:$0xff]
        %v1590 = vld [vmem:[%s270 + $0xf8] sm:$0xff]
        %v1591 = vld [vmem:[%s270 + $0x100] sm:$0xff]
        %v1592 = vld [vmem:[%s270 + $0x108] sm:$0xff]
        %v1593 = vld [vmem:[%s270 + $0x110] sm:$0xff]
        %v1594 = vld [vmem:[%s270 + $0x118] sm:$0xff]
        %v1595 = vld [vmem:[%s270 + $0x120] sm:$0xff]
        %v1596 = vld [vmem:[%s270 + $0x128] sm:$0xff]
        %v1597 = vld [vmem:[%s270 + $0x130] sm:$0xff]
        %v1598 = vld [vmem:[%s270 + $0x138] sm:$0xff]
        %v1599 = vld [vmem:[%s270 + $0x140] sm:$0xff]
        %v1600 = vld [vmem:[%s270 + $0x148] sm:$0xff]
        %v1601 = vld [vmem:[%s270 + $0x150] sm:$0xff]
        %v1602 = vld [vmem:[%s270 + $0x158] sm:$0xff]
        %v1603 = vld [vmem:[%s270 + $0x160] sm:$0xff]
        %v1604 = vld [vmem:[%s270 + $0x168] sm:$0xff]
        %v1605 = vld [vmem:[%s270 + $0x170] sm:$0xff]
        %v1606 = vld [vmem:[%s270 + $0x178] sm:$0xff]
        %v1607 = vld [vmem:[%s270 + $0x180] sm:$0xff]
        %v1608 = vld [vmem:[%s270 + $0x188] sm:$0xff]
        %v1609 = vld [vmem:[%s270 + $0x190] sm:$0xff]
        %v1610 = vld [vmem:[%s270 + $0x198] sm:$0xff]
        %v1611 = vld [vmem:[%s270 + $0x1a0] sm:$0xff]
        %v1612 = vld [vmem:[%s270 + $0x1a8] sm:$0xff]
        %v1613 = vld [vmem:[%s270 + $0x1b0] sm:$0xff]
        %v1614 = vld [vmem:[%s270 + $0x1b8] sm:$0xff]
        %v1615 = vld [vmem:[%s270 + $0x1c0] sm:$0xff]
        %v1616 = vld [vmem:[%s270 + $0x1c8] sm:$0xff]
        %v1617 = vld [vmem:[%s270 + $0x1d0] sm:$0xff]
        %v1618 = vld [vmem:[%s270 + $0x1d8] sm:$0xff]
        %v1619 = vld [vmem:[%s270 + $0x1e0] sm:$0xff]
        %v1620 = vld [vmem:[%s270 + $0x1e8] sm:$0xff]
        %v1621 = vld [vmem:[%s270 + $0x1f0] sm:$0xff]
        %v1622 = vld [vmem:[%s270 + $0x1f8] sm:$0xff]
        %v1623 = vld [vmem:[%s270 + $0x200] sm:$0xff]
        %v1624 = vld [vmem:[%s270 + $0x208] sm:$0xff]
        %v1625 = vld [vmem:[%s270 + $0x210] sm:$0xff]
        %v1626 = vld [vmem:[%s270 + $0x218] sm:$0xff]
        %v1627 = vld [vmem:[%s270 + $0x220] sm:$0xff]
        %v1628 = vld [vmem:[%s270 + $0x228] sm:$0xff]
        %v1629 = vld [vmem:[%s270 + $0x230] sm:$0xff]
        %v1630 = vld [vmem:[%s270 + $0x238] sm:$0xff]
        %v1631 = vld [vmem:[%s270 + $0x240] sm:$0xff]
        %v1632 = vld [vmem:[%s270 + $0x248] sm:$0xff]
        %v1633 = vld [vmem:[%s270 + $0x250] sm:$0xff]
        %v1634 = vld [vmem:[%s270 + $0x258] sm:$0xff]
        %v1635 = vld [vmem:[%s270 + $0x260] sm:$0xff]
        %v1636 = vld [vmem:[%s270 + $0x268] sm:$0xff]
        %v1637 = vld [vmem:[%s270 + $0x270] sm:$0xff]
        %v1638 = vld [vmem:[%s270 + $0x278] sm:$0xff]
        %v1639 = vld [vmem:[%s270 + $0x280] sm:$0xff]
        %v1640 = vld [vmem:[%s270 + $0x288] sm:$0xff]
        %v1641 = vld [vmem:[%s270 + $0x290] sm:$0xff]
        %v1642 = vld [vmem:[%s270 + $0x298] sm:$0xff]
        %v1643 = vld [vmem:[%s270 + $0x2a0] sm:$0xff]
        %v1644 = vld [vmem:[%s270 + $0x2a8] sm:$0xff]
        %v1645 = vld [vmem:[%s270 + $0x2b0] sm:$0xff]
        %v1646 = vld [vmem:[%s270 + $0x2b8] sm:$0xff]
        %v1647 = vld [vmem:[%s270 + $0x2c0] sm:$0xff]
        %v1648 = vld [vmem:[%s270 + $0x2c8] sm:$0xff]
        %v1649 = vld [vmem:[%s270 + $0x2d0] sm:$0xff]
        %v1650 = vld [vmem:[%s270 + $0x2d8] sm:$0xff]
        %v1651 = vld [vmem:[%s270 + $0x2e0] sm:$0xff]
        %v1652 = vld [vmem:[%s270 + $0x2e8] sm:$0xff]
        %v1653 = vld [vmem:[%s270 + $0x2f0] sm:$0xff]
        %v1654 = vld [vmem:[%s270 + $0x2f8] sm:$0xff]
        %v1655 = vld [vmem:[%s270 + $0x300] sm:$0xff]
        %v1656 = vld [vmem:[%s270 + $0x308] sm:$0xff]
        %v1657 = vld [vmem:[%s270 + $0x310] sm:$0xff]
        %v1658 = vld [vmem:[%s270 + $0x318] sm:$0xff]
        %v1659 = vld [vmem:[%s270 + $0x320] sm:$0xff]
        %v1660 = vld [vmem:[%s270 + $0x328] sm:$0xff]
        %v1661 = vld [vmem:[%s270 + $0x330] sm:$0xff]
        %v1662 = vld [vmem:[%s270 + $0x338] sm:$0xff]
        %v1663 = vld [vmem:[%s270 + $0x340] sm:$0xff]
        %v1664 = vld [vmem:[%s270 + $0x348] sm:$0xff]
        %v1665 = vld [vmem:[%s270 + $0x350] sm:$0xff]
        %v1666 = vld [vmem:[%s270 + $0x358] sm:$0xff]
        %v1667 = vld [vmem:[%s270 + $0x360] sm:$0xff]
        %v1668 = vld [vmem:[%s270 + $0x368] sm:$0xff]
        %v1669 = vld [vmem:[%s270 + $0x370] sm:$0xff]
        %v1670 = vld [vmem:[%s270 + $0x378] sm:$0xff]
        %v1671 = vld [vmem:[%s270 + $0x380] sm:$0xff]
        %v1672 = vld [vmem:[%s270 + $0x388] sm:$0xff]
        %v1673 = vld [vmem:[%s270 + $0x390] sm:$0xff]
        %v1674 = vld [vmem:[%s270 + $0x398] sm:$0xff]
        %v1675 = vld [vmem:[%s270 + $0x3a0] sm:$0xff]
        %v1676 = vld [vmem:[%s270 + $0x3a8] sm:$0xff]
        %v1677 = vld [vmem:[%s270 + $0x3b0] sm:$0xff]
        %v1678 = vld [vmem:[%s270 + $0x3b8] sm:$0xff]
        %v1679 = vld [vmem:[%s270 + $0x3c0] sm:$0xff]
        %v1680 = vld [vmem:[%s270 + $0x3c8] sm:$0xff]
        %v1681 = vld [vmem:[%s270 + $0x3d0] sm:$0xff]
        %v1682 = vld [vmem:[%s270 + $0x3d8] sm:$0xff]
        %v1683 = vld [vmem:[%s270 + $0x3e0] sm:$0xff]
        %v1684 = vld [vmem:[%s270 + $0x3e8] sm:$0xff]
        %v1685 = vld [vmem:[%s270 + $0x3f0] sm:$0xff]
        %v1686 = vld [vmem:[%s270 + $0x3f8] sm:$0xff]
        %v1687 = vld [vmem:[%s270 + $0x400] sm:$0xff]
        %v1688 = vld [vmem:[%s270 + $0x408] sm:$0xff]
        %v1689 = vld [vmem:[%s270 + $0x410] sm:$0xff]
        %v1690 = vld [vmem:[%s270 + $0x418] sm:$0xff]
        %v1691 = vld [vmem:[%s270 + $0x420] sm:$0xff]
        %v1692 = vld [vmem:[%s270 + $0x428] sm:$0xff]
        %v1693 = vld [vmem:[%s270 + $0x430] sm:$0xff]
        %v1694 = vld [vmem:[%s270 + $0x438] sm:$0xff]
        %v1695 = vld [vmem:[%s270 + $0x440] sm:$0xff]
        %v1696 = vld [vmem:[%s270 + $0x448] sm:$0xff]
        %v1697 = vld [vmem:[%s270 + $0x450] sm:$0xff]
        %v1698 = vld [vmem:[%s270 + $0x458] sm:$0xff]
        %v1699 = vld [vmem:[%s270 + $0x460] sm:$0xff]
        %v1700 = vld [vmem:[%s270 + $0x468] sm:$0xff]
        %v1701 = vld [vmem:[%s270 + $0x470] sm:$0xff]
        %v1702 = vld [vmem:[%s270 + $0x478] sm:$0xff]
        %v1703 = vld [vmem:[%s270 + $0x480] sm:$0xff]
        %v1704 = vld [vmem:[%s270 + $0x488] sm:$0xff]
        %v1705 = vld [vmem:[%s270 + $0x490] sm:$0xff]
        %v1706 = vld [vmem:[%s270 + $0x498] sm:$0xff]
        %v1707 = vld [vmem:[%s270 + $0x4a0] sm:$0xff]
        %v1708 = vld [vmem:[%s270 + $0x4a8] sm:$0xff]
        %v1709 = vld [vmem:[%s270 + $0x4b0] sm:$0xff]
        %v1710 = vld [vmem:[%s270 + $0x4b8] sm:$0xff]
        %v1711 = vld [vmem:[%s270 + $0x4c0] sm:$0xff]
        %v1712 = vld [vmem:[%s270 + $0x4c8] sm:$0xff]
        %v1713 = vld [vmem:[%s270 + $0x4d0] sm:$0xff]
        %v1714 = vld [vmem:[%s270 + $0x4d8] sm:$0xff]
        %v1715 = vld [vmem:[%s270 + $0x4e0] sm:$0xff]
        %v1716 = vld [vmem:[%s270 + $0x4e8] sm:$0xff]
        %v1717 = vld [vmem:[%s270 + $0x4f0] sm:$0xff]
        %v1718 = vld [vmem:[%s270 + $0x4f8] sm:$0xff]
        %v1719 = vld [vmem:[%s270 + $0x500] sm:$0xff]
        %v1720 = vld [vmem:[%s270 + $0x508] sm:$0xff]
        %v1721 = vld [vmem:[%s270 + $0x510] sm:$0xff]
        %v1722 = vld [vmem:[%s270 + $0x518] sm:$0xff]
        %v1723 = vld [vmem:[%s270 + $0x520] sm:$0xff]
        %v1724 = vld [vmem:[%s270 + $0x528] sm:$0xff]
        %v1725 = vld [vmem:[%s270 + $0x530] sm:$0xff]
        %v1726 = vld [vmem:[%s270 + $0x538] sm:$0xff]
        %v1727 = vld [vmem:[%s270 + $0x540] sm:$0xff]
        %v1728 = vld [vmem:[%s270 + $0x548] sm:$0xff]
        %v1729 = vld [vmem:[%s270 + $0x550] sm:$0xff]
        %v1730 = vld [vmem:[%s270 + $0x558] sm:$0xff]
        %v1731 = vld [vmem:[%s270 + $0x560] sm:$0xff]
        %v1732 = vld [vmem:[%s270 + $0x568] sm:$0xff]
        %v1733 = vld [vmem:[%s270 + $0x570] sm:$0xff]
        %v1734 = vld [vmem:[%s270 + $0x578] sm:$0xff]
        %v1735 = vld [vmem:[%s270 + $0x580] sm:$0xff]
        %v1736 = vld [vmem:[%s270 + $0x588] sm:$0xff]
        %v1737 = vld [vmem:[%s270 + $0x590] sm:$0xff]
        %v1738 = vld [vmem:[%s270 + $0x598] sm:$0xff]
        %v1739 = vld [vmem:[%s270 + $0x5a0] sm:$0xff]
        %v1740 = vld [vmem:[%s270 + $0x5a8] sm:$0xff]
        %v1741 = vld [vmem:[%s270 + $0x5b0] sm:$0xff]
        %v1742 = vld [vmem:[%s270 + $0x5b8] sm:$0xff]
        %v1743 = vld [vmem:[%s270 + $0x5c0] sm:$0xff]
        %v1744 = vld [vmem:[%s270 + $0x5c8] sm:$0xff]
        %v1745 = vld [vmem:[%s270 + $0x5d0] sm:$0xff]
        %v1746 = vld [vmem:[%s270 + $0x5d8] sm:$0xff]
        %v1747 = vld [vmem:[%s270 + $0x5e0] sm:$0xff]
        %v1748 = vld [vmem:[%s270 + $0x5e8] sm:$0xff]
        %v1749 = vld [vmem:[%s270 + $0x5f0] sm:$0xff]
        %v1750 = vld [vmem:[%s270 + $0x5f8] sm:$0xff]
        %v1751 = vld [vmem:[%s270 + $0x600] sm:$0xff]
        %v1752 = vld [vmem:[%s270 + $0x608] sm:$0xff]
        %v1753 = vld [vmem:[%s270 + $0x610] sm:$0xff]
        %v1754 = vld [vmem:[%s270 + $0x618] sm:$0xff]
        %v1755 = vld [vmem:[%s270 + $0x620] sm:$0xff]
        %v1756 = vld [vmem:[%s270 + $0x628] sm:$0xff]
        %v1757 = vld [vmem:[%s270 + $0x630] sm:$0xff]
        %v1758 = vld [vmem:[%s270 + $0x638] sm:$0xff]
        %v1759 = vld [vmem:[%s270 + $0x640] sm:$0xff]
        %v1760 = vld [vmem:[%s270 + $0x648] sm:$0xff]
        %v1761 = vld [vmem:[%s270 + $0x650] sm:$0xff]
        %v1762 = vld [vmem:[%s270 + $0x658] sm:$0xff]
        %v1763 = vld [vmem:[%s270 + $0x660] sm:$0xff]
        %v1764 = vld [vmem:[%s270 + $0x668] sm:$0xff]
        %v1765 = vld [vmem:[%s270 + $0x670] sm:$0xff]
        %v1766 = vld [vmem:[%s270 + $0x678] sm:$0xff]
        %v1767 = vld [vmem:[%s270 + $0x680] sm:$0xff]
        %v1768 = vld [vmem:[%s270 + $0x688] sm:$0xff]
        %v1769 = vld [vmem:[%s270 + $0x690] sm:$0xff]
        %v1770 = vld [vmem:[%s270 + $0x698] sm:$0xff]
        %v1771 = vld [vmem:[%s270 + $0x6a0] sm:$0xff]
        %v1772 = vld [vmem:[%s270 + $0x6a8] sm:$0xff]
        %v1773 = vld [vmem:[%s270 + $0x6b0] sm:$0xff]
        %v1774 = vld [vmem:[%s270 + $0x6b8] sm:$0xff]
        %v1775 = vld [vmem:[%s270 + $0x6c0] sm:$0xff]
        %v1776 = vld [vmem:[%s270 + $0x6c8] sm:$0xff]
        %v1777 = vld [vmem:[%s270 + $0x6d0] sm:$0xff]
        %v1778 = vld [vmem:[%s270 + $0x6d8] sm:$0xff]
        %v1779 = vld [vmem:[%s270 + $0x6e0] sm:$0xff]
        %v1780 = vld [vmem:[%s270 + $0x6e8] sm:$0xff]
        %v1781 = vld [vmem:[%s270 + $0x6f0] sm:$0xff]
        %v1782 = vld [vmem:[%s270 + $0x6f8] sm:$0xff]
        %v1783 = vld [vmem:[%s270 + $0x700] sm:$0xff]
        %v1784 = vld [vmem:[%s270 + $0x708] sm:$0xff]
        %v1785 = vld [vmem:[%s270 + $0x710] sm:$0xff]
        %v1786 = vld [vmem:[%s270 + $0x718] sm:$0xff]
        %v1787 = vld [vmem:[%s270 + $0x720] sm:$0xff]
        %v1788 = vld [vmem:[%s270 + $0x728] sm:$0xff]
        %v1789 = vld [vmem:[%s270 + $0x730] sm:$0xff]
        %v1790 = vld [vmem:[%s270 + $0x738] sm:$0xff]
        %v1791 = vld [vmem:[%s270 + $0x740] sm:$0xff]
        %v1792 = vld [vmem:[%s270 + $0x748] sm:$0xff]
        %v1793 = vld [vmem:[%s270 + $0x750] sm:$0xff]
        %v1794 = vld [vmem:[%s270 + $0x758] sm:$0xff]
        %v1795 = vld [vmem:[%s270 + $0x760] sm:$0xff]
        %v1796 = vld [vmem:[%s270 + $0x768] sm:$0xff]
        %v1797 = vld [vmem:[%s270 + $0x770] sm:$0xff]
        %v1798 = vld [vmem:[%s270 + $0x778] sm:$0xff]
        %v1799 = vld [vmem:[%s270 + $0x780] sm:$0xff]
        %v1800 = vld [vmem:[%s270 + $0x788] sm:$0xff]
        %v1801 = vld [vmem:[%s270 + $0x790] sm:$0xff]
        %v1802 = vld [vmem:[%s270 + $0x798] sm:$0xff]
        %v1803 = vld [vmem:[%s270 + $0x7a0] sm:$0xff]
        %v1804 = vld [vmem:[%s270 + $0x7a8] sm:$0xff]
        %v1805 = vld [vmem:[%s270 + $0x7b0] sm:$0xff]
        %v1806 = vld [vmem:[%s270 + $0x7b8] sm:$0xff]
        %v1807 = vld [vmem:[%s270 + $0x7c0] sm:$0xff]
        %v1808 = vld [vmem:[%s270 + $0x7c8] sm:$0xff]
        %v1809 = vld [vmem:[%s270 + $0x7d0] sm:$0xff]
        %v1810 = vld [vmem:[%s270 + $0x7d8] sm:$0xff]
        %v1811 = vld [vmem:[%s270 + $0x7e0] sm:$0xff]
        %v1812 = vld [vmem:[%s270 + $0x7e8] sm:$0xff]
        %v1813 = vld [vmem:[%s270 + $0x7f0] sm:$0xff]
        %v1814 = vld [vmem:[%s270 + $0x7f8] sm:$0xff]
        %v2071 = vlaneseq
        %v2072 = vand.u32 %v2071, 127
        %v2073 = vperm.slane %v1302, %v2072
        %v2074 = vadd.s32 %v2072, 4294967288
        %v2075 = vperm.slane %v1303, %v2074
        %vm2076 = vcmask 130112
        %v2077 = vsel %vm2076, %v2075, %v2073
        %v2078 = vadd.s32 %v2072, 4294967280
        %v2079 = vperm.slane %v1304, %v2078
        %vm2080 = vcmask 195712
        %v2081 = vsel %vm2080, %v2079, %v2077
        %v2082 = vadd.s32 %v2072, 4294967272
        %v2083 = vperm.slane %v1305, %v2082
        %vm2084 = vcmask 261312
        %v2085 = vsel %vm2084, %v2083, %v2081
        %v2086 = vadd.s32 %v2072, 4294967264
        %v2087 = vperm.slane %v1306, %v2086
        %vm2088 = vcmask 326912
        %v2089 = vsel %vm2088, %v2087, %v2085
        %v2090 = vadd.s32 %v2072, 4294967256
        %v2091 = vperm.slane %v1307, %v2090
        %vm2092 = vcmask 392512
        %v2093 = vsel %vm2092, %v2091, %v2089
        %v2094 = vadd.s32 %v2072, 4294967248
        %v2095 = vperm.slane %v1308, %v2094
        %vm2096 = vcmask 458112
        %v2097 = vsel %vm2096, %v2095, %v2093
        %v2098 = vadd.s32 %v2072, 4294967240
        %v2099 = vperm.slane %v1309, %v2098
        %vm2100 = vcmask 523712
        %v2101 = vsel %vm2100, %v2099, %v2097
        %v2102 = vadd.s32 %v2072, 4294967232
        %v2103 = vperm.slane %v1310, %v2102
        %vm2104 = vcmask 589312
        %v2105 = vsel %vm2104, %v2103, %v2101
        %v2106 = vadd.s32 %v2072, 4294967224
        %v2107 = vperm.slane %v1311, %v2106
        %vm2108 = vcmask 654912
        %v2109 = vsel %vm2108, %v2107, %v2105
        %v2110 = vadd.s32 %v2072, 4294967216
        %v2111 = vperm.slane %v1312, %v2110
        %vm2112 = vcmask 720512
        %v2113 = vsel %vm2112, %v2111, %v2109
        %v2114 = vadd.s32 %v2072, 4294967208
        %v2115 = vperm.slane %v1313, %v2114
        %vm2116 = vcmask 786112
        %v2117 = vsel %vm2116, %v2115, %v2113
        %v2118 = vadd.s32 %v2072, 4294967200
        %v2119 = vperm.slane %v1314, %v2118
        %vm2120 = vcmask 851712
        %v2121 = vsel %vm2120, %v2119, %v2117
        %v2122 = vadd.s32 %v2072, 4294967192
        %v2123 = vperm.slane %v1315, %v2122
        %vm2124 = vcmask 917312
        %v2125 = vsel %vm2124, %v2123, %v2121
        %v2126 = vadd.s32 %v2072, 4294967184
        %v2127 = vperm.slane %v1316, %v2126
        %vm2128 = vcmask 982912
        %v2129 = vsel %vm2128, %v2127, %v2125
        %v2130 = vadd.s32 %v2072, 4294967176
        %v2131 = vperm.slane %v1317, %v2130
        %vm2132 = vcmask 1048512
        %v2133 = vsel %vm2132, %v2131, %v2129
        %v2134 = vperm.slane %v1318, %v2072
        %v2135 = vperm.slane %v1319, %v2074
        %v2136 = vsel %vm2076, %v2135, %v2134
        %v2137 = vperm.slane %v1320, %v2078
        %v2138 = vsel %vm2080, %v2137, %v2136
        %v2139 = vperm.slane %v1321, %v2082
        %v2140 = vsel %vm2084, %v2139, %v2138
        %v2141 = vperm.slane %v1322, %v2086
        %v2142 = vsel %vm2088, %v2141, %v2140
        %v2143 = vperm.slane %v1323, %v2090
        %v2144 = vsel %vm2092, %v2143, %v2142
        %v2145 = vperm.slane %v1324, %v2094
        %v2146 = vsel %vm2096, %v2145, %v2144
        %v2147 = vperm.slane %v1325, %v2098
        %v2148 = vsel %vm2100, %v2147, %v2146
        %v2149 = vperm.slane %v1326, %v2102
        %v2150 = vsel %vm2104, %v2149, %v2148
        %v2151 = vperm.slane %v1327, %v2106
        %v2152 = vsel %vm2108, %v2151, %v2150
        %v2153 = vperm.slane %v1328, %v2110
        %v2154 = vsel %vm2112, %v2153, %v2152
        %v2155 = vperm.slane %v1329, %v2114
        %v2156 = vsel %vm2116, %v2155, %v2154
        %v2157 = vperm.slane %v1330, %v2118
        %v2158 = vsel %vm2120, %v2157, %v2156
        %v2159 = vperm.slane %v1331, %v2122
        %v2160 = vsel %vm2124, %v2159, %v2158
        %v2161 = vperm.slane %v1332, %v2126
        %v2162 = vsel %vm2128, %v2161, %v2160
        %v2163 = vperm.slane %v1333, %v2130
        %v2164 = vsel %vm2132, %v2163, %v2162
        %v2165 = vperm.slane %v1334, %v2072
        %v2166 = vperm.slane %v1335, %v2074
        %v2167 = vsel %vm2076, %v2166, %v2165
        %v2168 = vperm.slane %v1336, %v2078
        %v2169 = vsel %vm2080, %v2168, %v2167
        %v2170 = vperm.slane %v1337, %v2082
        %v2171 = vsel %vm2084, %v2170, %v2169
        %v2172 = vperm.slane %v1338, %v2086
        %v2173 = vsel %vm2088, %v2172, %v2171
        %v2174 = vperm.slane %v1339, %v2090
        %v2175 = vsel %vm2092, %v2174, %v2173
        %v2176 = vperm.slane %v1340, %v2094
        %v2177 = vsel %vm2096, %v2176, %v2175
        %v2178 = vperm.slane %v1341, %v2098
        %v2179 = vsel %vm2100, %v2178, %v2177
        %v2180 = vperm.slane %v1342, %v2102
        %v2181 = vsel %vm2104, %v2180, %v2179
        %v2182 = vperm.slane %v1343, %v2106
        %v2183 = vsel %vm2108, %v2182, %v2181
        %v2184 = vperm.slane %v1344, %v2110
        %v2185 = vsel %vm2112, %v2184, %v2183
        %v2186 = vperm.slane %v1345, %v2114
        %v2187 = vsel %vm2116, %v2186, %v2185
        %v2188 = vperm.slane %v1346, %v2118
        %v2189 = vsel %vm2120, %v2188, %v2187
        %v2190 = vperm.slane %v1347, %v2122
        %v2191 = vsel %vm2124, %v2190, %v2189
        %v2192 = vperm.slane %v1348, %v2126
        %v2193 = vsel %vm2128, %v2192, %v2191
        %v2194 = vperm.slane %v1349, %v2130
        %v2195 = vsel %vm2132, %v2194, %v2193
        %v2196 = vperm.slane %v1350, %v2072
        %v2197 = vperm.slane %v1351, %v2074
        %v2198 = vsel %vm2076, %v2197, %v2196
        %v2199 = vperm.slane %v1352, %v2078
        %v2200 = vsel %vm2080, %v2199, %v2198
        %v2201 = vperm.slane %v1353, %v2082
        %v2202 = vsel %vm2084, %v2201, %v2200
        %v2203 = vperm.slane %v1354, %v2086
        %v2204 = vsel %vm2088, %v2203, %v2202
        %v2205 = vperm.slane %v1355, %v2090
        %v2206 = vsel %vm2092, %v2205, %v2204
        %v2207 = vperm.slane %v1356, %v2094
        %v2208 = vsel %vm2096, %v2207, %v2206
        %v2209 = vperm.slane %v1357, %v2098
        %v2210 = vsel %vm2100, %v2209, %v2208
        %v2211 = vperm.slane %v1358, %v2102
        %v2212 = vsel %vm2104, %v2211, %v2210
        %v2213 = vperm.slane %v1359, %v2106
        %v2214 = vsel %vm2108, %v2213, %v2212
        %v2215 = vperm.slane %v1360, %v2110
        %v2216 = vsel %vm2112, %v2215, %v2214
        %v2217 = vperm.slane %v1361, %v2114
        %v2218 = vsel %vm2116, %v2217, %v2216
        %v2219 = vperm.slane %v1362, %v2118
        %v2220 = vsel %vm2120, %v2219, %v2218
        %v2221 = vperm.slane %v1363, %v2122
        %v2222 = vsel %vm2124, %v2221, %v2220
        %v2223 = vperm.slane %v1364, %v2126
        %v2224 = vsel %vm2128, %v2223, %v2222
        %v2225 = vperm.slane %v1365, %v2130
        %v2226 = vsel %vm2132, %v2225, %v2224
        %v2227 = vperm.slane %v1366, %v2072
        %v2228 = vperm.slane %v1367, %v2074
        %v2229 = vsel %vm2076, %v2228, %v2227
        %v2230 = vperm.slane %v1368, %v2078
        %v2231 = vsel %vm2080, %v2230, %v2229
        %v2232 = vperm.slane %v1369, %v2082
        %v2233 = vsel %vm2084, %v2232, %v2231
        %v2234 = vperm.slane %v1370, %v2086
        %v2235 = vsel %vm2088, %v2234, %v2233
        %v2236 = vperm.slane %v1371, %v2090
        %v2237 = vsel %vm2092, %v2236, %v2235
        %v2238 = vperm.slane %v1372, %v2094
        %v2239 = vsel %vm2096, %v2238, %v2237
        %v2240 = vperm.slane %v1373, %v2098
        %v2241 = vsel %vm2100, %v2240, %v2239
        %v2242 = vperm.slane %v1374, %v2102
        %v2243 = vsel %vm2104, %v2242, %v2241
        %v2244 = vperm.slane %v1375, %v2106
        %v2245 = vsel %vm2108, %v2244, %v2243
        %v2246 = vperm.slane %v1376, %v2110
        %v2247 = vsel %vm2112, %v2246, %v2245
        %v2248 = vperm.slane %v1377, %v2114
        %v2249 = vsel %vm2116, %v2248, %v2247
        %v2250 = vperm.slane %v1378, %v2118
        %v2251 = vsel %vm2120, %v2250, %v2249
        %v2252 = vperm.slane %v1379, %v2122
        %v2253 = vsel %vm2124, %v2252, %v2251
        %v2254 = vperm.slane %v1380, %v2126
        %v2255 = vsel %vm2128, %v2254, %v2253
        %v2256 = vperm.slane %v1381, %v2130
        %v2257 = vsel %vm2132, %v2256, %v2255
        %v2258 = vperm.slane %v1382, %v2072
        %v2259 = vperm.slane %v1383, %v2074
        %v2260 = vsel %vm2076, %v2259, %v2258
        %v2261 = vperm.slane %v1384, %v2078
        %v2262 = vsel %vm2080, %v2261, %v2260
        %v2263 = vperm.slane %v1385, %v2082
        %v2264 = vsel %vm2084, %v2263, %v2262
        %v2265 = vperm.slane %v1386, %v2086
        %v2266 = vsel %vm2088, %v2265, %v2264
        %v2267 = vperm.slane %v1387, %v2090
        %v2268 = vsel %vm2092, %v2267, %v2266
        %v2269 = vperm.slane %v1388, %v2094
        %v2270 = vsel %vm2096, %v2269, %v2268
        %v2271 = vperm.slane %v1389, %v2098
        %v2272 = vsel %vm2100, %v2271, %v2270
        %v2273 = vperm.slane %v1390, %v2102
        %v2274 = vsel %vm2104, %v2273, %v2272
        %v2275 = vperm.slane %v1391, %v2106
        %v2276 = vsel %vm2108, %v2275, %v2274
        %v2277 = vperm.slane %v1392, %v2110
        %v2278 = vsel %vm2112, %v2277, %v2276
        %v2279 = vperm.slane %v1393, %v2114
        %v2280 = vsel %vm2116, %v2279, %v2278
        %v2281 = vperm.slane %v1394, %v2118
        %v2282 = vsel %vm2120, %v2281, %v2280
        %v2283 = vperm.slane %v1395, %v2122
        %v2284 = vsel %vm2124, %v2283, %v2282
        %v2285 = vperm.slane %v1396, %v2126
        %v2286 = vsel %vm2128, %v2285, %v2284
        %v2287 = vperm.slane %v1397, %v2130
        %v2288 = vsel %vm2132, %v2287, %v2286
        %v2289 = vperm.slane %v1398, %v2072
        %v2290 = vperm.slane %v1399, %v2074
        %v2291 = vsel %vm2076, %v2290, %v2289
        %v2292 = vperm.slane %v1400, %v2078
        %v2293 = vsel %vm2080, %v2292, %v2291
        %v2294 = vperm.slane %v1401, %v2082
        %v2295 = vsel %vm2084, %v2294, %v2293
        %v2296 = vperm.slane %v1402, %v2086
        %v2297 = vsel %vm2088, %v2296, %v2295
        %v2298 = vperm.slane %v1403, %v2090
        %v2299 = vsel %vm2092, %v2298, %v2297
        %v2300 = vperm.slane %v1404, %v2094
        %v2301 = vsel %vm2096, %v2300, %v2299
        %v2302 = vperm.slane %v1405, %v2098
        %v2303 = vsel %vm2100, %v2302, %v2301
        %v2304 = vperm.slane %v1406, %v2102
        %v2305 = vsel %vm2104, %v2304, %v2303
        %v2306 = vperm.slane %v1407, %v2106
        %v2307 = vsel %vm2108, %v2306, %v2305
        %v2308 = vperm.slane %v1408, %v2110
        %v2309 = vsel %vm2112, %v2308, %v2307
        %v2310 = vperm.slane %v1409, %v2114
        %v2311 = vsel %vm2116, %v2310, %v2309
        %v2312 = vperm.slane %v1410, %v2118
        %v2313 = vsel %vm2120, %v2312, %v2311
        %v2314 = vperm.slane %v1411, %v2122
        %v2315 = vsel %vm2124, %v2314, %v2313
        %v2316 = vperm.slane %v1412, %v2126
        %v2317 = vsel %vm2128, %v2316, %v2315
        %v2318 = vperm.slane %v1413, %v2130
        %v2319 = vsel %vm2132, %v2318, %v2317
        %v2320 = vperm.slane %v1414, %v2072
        %v2321 = vperm.slane %v1415, %v2074
        %v2322 = vsel %vm2076, %v2321, %v2320
        %v2323 = vperm.slane %v1416, %v2078
        %v2324 = vsel %vm2080, %v2323, %v2322
        %v2325 = vperm.slane %v1417, %v2082
        %v2326 = vsel %vm2084, %v2325, %v2324
        %v2327 = vperm.slane %v1418, %v2086
        %v2328 = vsel %vm2088, %v2327, %v2326
        %v2329 = vperm.slane %v1419, %v2090
        %v2330 = vsel %vm2092, %v2329, %v2328
        %v2331 = vperm.slane %v1420, %v2094
        %v2332 = vsel %vm2096, %v2331, %v2330
        %v2333 = vperm.slane %v1421, %v2098
        %v2334 = vsel %vm2100, %v2333, %v2332
        %v2335 = vperm.slane %v1422, %v2102
        %v2336 = vsel %vm2104, %v2335, %v2334
        %v2337 = vperm.slane %v1423, %v2106
        %v2338 = vsel %vm2108, %v2337, %v2336
        %v2339 = vperm.slane %v1424, %v2110
        %v2340 = vsel %vm2112, %v2339, %v2338
        %v2341 = vperm.slane %v1425, %v2114
        %v2342 = vsel %vm2116, %v2341, %v2340
        %v2343 = vperm.slane %v1426, %v2118
        %v2344 = vsel %vm2120, %v2343, %v2342
        %v2345 = vperm.slane %v1427, %v2122
        %v2346 = vsel %vm2124, %v2345, %v2344
        %v2347 = vperm.slane %v1428, %v2126
        %v2348 = vsel %vm2128, %v2347, %v2346
        %v2349 = vperm.slane %v1429, %v2130
        %v2350 = vsel %vm2132, %v2349, %v2348
        %v2351 = vperm.slane %v1430, %v2072
        %v2352 = vperm.slane %v1431, %v2074
        %v2353 = vsel %vm2076, %v2352, %v2351
        %v2354 = vperm.slane %v1432, %v2078
        %v2355 = vsel %vm2080, %v2354, %v2353
        %v2356 = vperm.slane %v1433, %v2082
        %v2357 = vsel %vm2084, %v2356, %v2355
        %v2358 = vperm.slane %v1434, %v2086
        %v2359 = vsel %vm2088, %v2358, %v2357
        %v2360 = vperm.slane %v1435, %v2090
        %v2361 = vsel %vm2092, %v2360, %v2359
        %v2362 = vperm.slane %v1436, %v2094
        %v2363 = vsel %vm2096, %v2362, %v2361
        %v2364 = vperm.slane %v1437, %v2098
        %v2365 = vsel %vm2100, %v2364, %v2363
        %v2366 = vperm.slane %v1438, %v2102
        %v2367 = vsel %vm2104, %v2366, %v2365
        %v2368 = vperm.slane %v1439, %v2106
        %v2369 = vsel %vm2108, %v2368, %v2367
        %v2370 = vperm.slane %v1440, %v2110
        %v2371 = vsel %vm2112, %v2370, %v2369
        %v2372 = vperm.slane %v1441, %v2114
        %v2373 = vsel %vm2116, %v2372, %v2371
        %v2374 = vperm.slane %v1442, %v2118
        %v2375 = vsel %vm2120, %v2374, %v2373
        %v2376 = vperm.slane %v1443, %v2122
        %v2377 = vsel %vm2124, %v2376, %v2375
        %v2378 = vperm.slane %v1444, %v2126
        %v2379 = vsel %vm2128, %v2378, %v2377
        %v2380 = vperm.slane %v1445, %v2130
        %v2381 = vsel %vm2132, %v2380, %v2379
        %v2382 = vperm.slane %v1446, %v2072
        %v2383 = vperm.slane %v1447, %v2074
        %v2384 = vsel %vm2076, %v2383, %v2382
        %v2385 = vperm.slane %v1448, %v2078
        %v2386 = vsel %vm2080, %v2385, %v2384
        %v2387 = vperm.slane %v1449, %v2082
        %v2388 = vsel %vm2084, %v2387, %v2386
        %v2389 = vperm.slane %v1450, %v2086
        %v2390 = vsel %vm2088, %v2389, %v2388
        %v2391 = vperm.slane %v1451, %v2090
        %v2392 = vsel %vm2092, %v2391, %v2390
        %v2393 = vperm.slane %v1452, %v2094
        %v2394 = vsel %vm2096, %v2393, %v2392
        %v2395 = vperm.slane %v1453, %v2098
        %v2396 = vsel %vm2100, %v2395, %v2394
        %v2397 = vperm.slane %v1454, %v2102
        %v2398 = vsel %vm2104, %v2397, %v2396
        %v2399 = vperm.slane %v1455, %v2106
        %v2400 = vsel %vm2108, %v2399, %v2398
        %v2401 = vperm.slane %v1456, %v2110
        %v2402 = vsel %vm2112, %v2401, %v2400
        %v2403 = vperm.slane %v1457, %v2114
        %v2404 = vsel %vm2116, %v2403, %v2402
        %v2405 = vperm.slane %v1458, %v2118
        %v2406 = vsel %vm2120, %v2405, %v2404
        %v2407 = vperm.slane %v1459, %v2122
        %v2408 = vsel %vm2124, %v2407, %v2406
        %v2409 = vperm.slane %v1460, %v2126
        %v2410 = vsel %vm2128, %v2409, %v2408
        %v2411 = vperm.slane %v1461, %v2130
        %v2412 = vsel %vm2132, %v2411, %v2410
        %v2413 = vperm.slane %v1462, %v2072
        %v2414 = vperm.slane %v1463, %v2074
        %v2415 = vsel %vm2076, %v2414, %v2413
        %v2416 = vperm.slane %v1464, %v2078
        %v2417 = vsel %vm2080, %v2416, %v2415
        %v2418 = vperm.slane %v1465, %v2082
        %v2419 = vsel %vm2084, %v2418, %v2417
        %v2420 = vperm.slane %v1466, %v2086
        %v2421 = vsel %vm2088, %v2420, %v2419
        %v2422 = vperm.slane %v1467, %v2090
        %v2423 = vsel %vm2092, %v2422, %v2421
        %v2424 = vperm.slane %v1468, %v2094
        %v2425 = vsel %vm2096, %v2424, %v2423
        %v2426 = vperm.slane %v1469, %v2098
        %v2427 = vsel %vm2100, %v2426, %v2425
        %v2428 = vperm.slane %v1470, %v2102
        %v2429 = vsel %vm2104, %v2428, %v2427
        %v2430 = vperm.slane %v1471, %v2106
        %v2431 = vsel %vm2108, %v2430, %v2429
        %v2432 = vperm.slane %v1472, %v2110
        %v2433 = vsel %vm2112, %v2432, %v2431
        %v2434 = vperm.slane %v1473, %v2114
        %v2435 = vsel %vm2116, %v2434, %v2433
        %v2436 = vperm.slane %v1474, %v2118
        %v2437 = vsel %vm2120, %v2436, %v2435
        %v2438 = vperm.slane %v1475, %v2122
        %v2439 = vsel %vm2124, %v2438, %v2437
        %v2440 = vperm.slane %v1476, %v2126
        %v2441 = vsel %vm2128, %v2440, %v2439
        %v2442 = vperm.slane %v1477, %v2130
        %v2443 = vsel %vm2132, %v2442, %v2441
        %v2444 = vperm.slane %v1478, %v2072
        %v2445 = vperm.slane %v1479, %v2074
        %v2446 = vsel %vm2076, %v2445, %v2444
        %v2447 = vperm.slane %v1480, %v2078
        %v2448 = vsel %vm2080, %v2447, %v2446
        %v2449 = vperm.slane %v1481, %v2082
        %v2450 = vsel %vm2084, %v2449, %v2448
        %v2451 = vperm.slane %v1482, %v2086
        %v2452 = vsel %vm2088, %v2451, %v2450
        %v2453 = vperm.slane %v1483, %v2090
        %v2454 = vsel %vm2092, %v2453, %v2452
        %v2455 = vperm.slane %v1484, %v2094
        %v2456 = vsel %vm2096, %v2455, %v2454
        %v2457 = vperm.slane %v1485, %v2098
        %v2458 = vsel %vm2100, %v2457, %v2456
        %v2459 = vperm.slane %v1486, %v2102
        %v2460 = vsel %vm2104, %v2459, %v2458
        %v2461 = vperm.slane %v1487, %v2106
        %v2462 = vsel %vm2108, %v2461, %v2460
        %v2463 = vperm.slane %v1488, %v2110
        %v2464 = vsel %vm2112, %v2463, %v2462
        %v2465 = vperm.slane %v1489, %v2114
        %v2466 = vsel %vm2116, %v2465, %v2464
        %v2467 = vperm.slane %v1490, %v2118
        %v2468 = vsel %vm2120, %v2467, %v2466
        %v2469 = vperm.slane %v1491, %v2122
        %v2470 = vsel %vm2124, %v2469, %v2468
        %v2471 = vperm.slane %v1492, %v2126
        %v2472 = vsel %vm2128, %v2471, %v2470
        %v2473 = vperm.slane %v1493, %v2130
        %v2474 = vsel %vm2132, %v2473, %v2472
        %v2475 = vperm.slane %v1494, %v2072
        %v2476 = vperm.slane %v1495, %v2074
        %v2477 = vsel %vm2076, %v2476, %v2475
        %v2478 = vperm.slane %v1496, %v2078
        %v2479 = vsel %vm2080, %v2478, %v2477
        %v2480 = vperm.slane %v1497, %v2082
        %v2481 = vsel %vm2084, %v2480, %v2479
        %v2482 = vperm.slane %v1498, %v2086
        %v2483 = vsel %vm2088, %v2482, %v2481
        %v2484 = vperm.slane %v1499, %v2090
        %v2485 = vsel %vm2092, %v2484, %v2483
        %v2486 = vperm.slane %v1500, %v2094
        %v2487 = vsel %vm2096, %v2486, %v2485
        %v2488 = vperm.slane %v1501, %v2098
        %v2489 = vsel %vm2100, %v2488, %v2487
        %v2490 = vperm.slane %v1502, %v2102
        %v2491 = vsel %vm2104, %v2490, %v2489
        %v2492 = vperm.slane %v1503, %v2106
        %v2493 = vsel %vm2108, %v2492, %v2491
        %v2494 = vperm.slane %v1504, %v2110
        %v2495 = vsel %vm2112, %v2494, %v2493
        %v2496 = vperm.slane %v1505, %v2114
        %v2497 = vsel %vm2116, %v2496, %v2495
        %v2498 = vperm.slane %v1506, %v2118
        %v2499 = vsel %vm2120, %v2498, %v2497
        %v2500 = vperm.slane %v1507, %v2122
        %v2501 = vsel %vm2124, %v2500, %v2499
        %v2502 = vperm.slane %v1508, %v2126
        %v2503 = vsel %vm2128, %v2502, %v2501
        %v2504 = vperm.slane %v1509, %v2130
        %v2505 = vsel %vm2132, %v2504, %v2503
        %v2506 = vperm.slane %v1510, %v2072
        %v2507 = vperm.slane %v1511, %v2074
        %v2508 = vsel %vm2076, %v2507, %v2506
        %v2509 = vperm.slane %v1512, %v2078
        %v2510 = vsel %vm2080, %v2509, %v2508
        %v2511 = vperm.slane %v1513, %v2082
        %v2512 = vsel %vm2084, %v2511, %v2510
        %v2513 = vperm.slane %v1514, %v2086
        %v2514 = vsel %vm2088, %v2513, %v2512
        %v2515 = vperm.slane %v1515, %v2090
        %v2516 = vsel %vm2092, %v2515, %v2514
        %v2517 = vperm.slane %v1516, %v2094
        %v2518 = vsel %vm2096, %v2517, %v2516
        %v2519 = vperm.slane %v1517, %v2098
        %v2520 = vsel %vm2100, %v2519, %v2518
        %v2521 = vperm.slane %v1518, %v2102
        %v2522 = vsel %vm2104, %v2521, %v2520
        %v2523 = vperm.slane %v1519, %v2106
        %v2524 = vsel %vm2108, %v2523, %v2522
        %v2525 = vperm.slane %v1520, %v2110
        %v2526 = vsel %vm2112, %v2525, %v2524
        %v2527 = vperm.slane %v1521, %v2114
        %v2528 = vsel %vm2116, %v2527, %v2526
        %v2529 = vperm.slane %v1522, %v2118
        %v2530 = vsel %vm2120, %v2529, %v2528
        %v2531 = vperm.slane %v1523, %v2122
        %v2532 = vsel %vm2124, %v2531, %v2530
        %v2533 = vperm.slane %v1524, %v2126
        %v2534 = vsel %vm2128, %v2533, %v2532
        %v2535 = vperm.slane %v1525, %v2130
        %v2536 = vsel %vm2132, %v2535, %v2534
        %v2537 = vperm.slane %v1526, %v2072
        %v2538 = vperm.slane %v1527, %v2074
        %v2539 = vsel %vm2076, %v2538, %v2537
        %v2540 = vperm.slane %v1528, %v2078
        %v2541 = vsel %vm2080, %v2540, %v2539
        %v2542 = vperm.slane %v1529, %v2082
        %v2543 = vsel %vm2084, %v2542, %v2541
        %v2544 = vperm.slane %v1530, %v2086
        %v2545 = vsel %vm2088, %v2544, %v2543
        %v2546 = vperm.slane %v1531, %v2090
        %v2547 = vsel %vm2092, %v2546, %v2545
        %v2548 = vperm.slane %v1532, %v2094
        %v2549 = vsel %vm2096, %v2548, %v2547
        %v2550 = vperm.slane %v1533, %v2098
        %v2551 = vsel %vm2100, %v2550, %v2549
        %v2552 = vperm.slane %v1534, %v2102
        %v2553 = vsel %vm2104, %v2552, %v2551
        %v2554 = vperm.slane %v1535, %v2106
        %v2555 = vsel %vm2108, %v2554, %v2553
        %v2556 = vperm.slane %v1536, %v2110
        %v2557 = vsel %vm2112, %v2556, %v2555
        %v2558 = vperm.slane %v1537, %v2114
        %v2559 = vsel %vm2116, %v2558, %v2557
        %v2560 = vperm.slane %v1538, %v2118
        %v2561 = vsel %vm2120, %v2560, %v2559
        %v2562 = vperm.slane %v1539, %v2122
        %v2563 = vsel %vm2124, %v2562, %v2561
        %v2564 = vperm.slane %v1540, %v2126
        %v2565 = vsel %vm2128, %v2564, %v2563
        %v2566 = vperm.slane %v1541, %v2130
        %v2567 = vsel %vm2132, %v2566, %v2565
        %v2568 = vperm.slane %v1542, %v2072
        %v2569 = vperm.slane %v1543, %v2074
        %v2570 = vsel %vm2076, %v2569, %v2568
        %v2571 = vperm.slane %v1544, %v2078
        %v2572 = vsel %vm2080, %v2571, %v2570
        %v2573 = vperm.slane %v1545, %v2082
        %v2574 = vsel %vm2084, %v2573, %v2572
        %v2575 = vperm.slane %v1546, %v2086
        %v2576 = vsel %vm2088, %v2575, %v2574
        %v2577 = vperm.slane %v1547, %v2090
        %v2578 = vsel %vm2092, %v2577, %v2576
        %v2579 = vperm.slane %v1548, %v2094
        %v2580 = vsel %vm2096, %v2579, %v2578
        %v2581 = vperm.slane %v1549, %v2098
        %v2582 = vsel %vm2100, %v2581, %v2580
        %v2583 = vperm.slane %v1550, %v2102
        %v2584 = vsel %vm2104, %v2583, %v2582
        %v2585 = vperm.slane %v1551, %v2106
        %v2586 = vsel %vm2108, %v2585, %v2584
        %v2587 = vperm.slane %v1552, %v2110
        %v2588 = vsel %vm2112, %v2587, %v2586
        %v2589 = vperm.slane %v1553, %v2114
        %v2590 = vsel %vm2116, %v2589, %v2588
        %v2591 = vperm.slane %v1554, %v2118
        %v2592 = vsel %vm2120, %v2591, %v2590
        %v2593 = vperm.slane %v1555, %v2122
        %v2594 = vsel %vm2124, %v2593, %v2592
        %v2595 = vperm.slane %v1556, %v2126
        %v2596 = vsel %vm2128, %v2595, %v2594
        %v2597 = vperm.slane %v1557, %v2130
        %v2598 = vsel %vm2132, %v2597, %v2596
        %2615 = vmatpush.msra.mxu0 %v1574
        %2616 = vmatpush.msra.mxu0 %v1573
        %2617 = vmatpush.msra.mxu0 %v1572
        %2618 = vmatpush.msra.mxu0 %v1571
        %2619 = vmatpush.msra.mxu0 %v1570
        %2620 = vmatpush.msra.mxu0 %v1569
        %2621 = vmatpush.msra.mxu0 %v1568
        %2622 = vmatpush.msra.mxu0 %v1567
        %2623 = vmatpush.msra.mxu0 %v1566
        %2624 = vmatpush.msra.mxu0 %v1565
        %2625 = vmatpush.msra.mxu0 %v1564
        %2626 = vmatpush.msra.mxu0 %v1563
        %2627 = vmatpush.msra.mxu0 %v1562
        %2628 = vmatpush.msra.mxu0 %v1561
        %2629 = vmatpush.msra.mxu0 %v1560
        %2630 = vmatpush.msra.mxu0 %v1559
        %2631 = vmatmul.f32.gmra.mxu0 %v2133
        %v2632 = vpop.f32.mrf.mxu0
        %v2633 = vadd.f32 0.0, %v2632
        %2634 = vdwg.mxu0
        %2635 = vmatpush.msra.mxu0 %v1590
        %2636 = vmatpush.msra.mxu0 %v1589
        %2637 = vmatpush.msra.mxu0 %v1588
        %2638 = vmatpush.msra.mxu0 %v1587
        %2639 = vmatpush.msra.mxu0 %v1586
        %2640 = vmatpush.msra.mxu0 %v1585
        %2641 = vmatpush.msra.mxu0 %v1584
        %2642 = vmatpush.msra.mxu0 %v1583
        %2643 = vmatpush.msra.mxu0 %v1582
        %2644 = vmatpush.msra.mxu0 %v1581
        %2645 = vmatpush.msra.mxu0 %v1580
        %2646 = vmatpush.msra.mxu0 %v1579
        %2647 = vmatpush.msra.mxu0 %v1578
        %2648 = vmatpush.msra.mxu0 %v1577
        %2649 = vmatpush.msra.mxu0 %v1576
        %2650 = vmatpush.msra.mxu0 %v1575
        %2651 = vmatmul.f32.gmra.mxu0 %v2164
        %v2652 = vpop.f32.mrf.mxu0
        %v2653 = vadd.f32 %v2633, %v2652
        %2654 = vdwg.mxu0
        %2655 = vmatpush.msra.mxu0 %v1606
        %2656 = vmatpush.msra.mxu0 %v1605
        %2657 = vmatpush.msra.mxu0 %v1604
        %2658 = vmatpush.msra.mxu0 %v1603
        %2659 = vmatpush.msra.mxu0 %v1602
        %2660 = vmatpush.msra.mxu0 %v1601
        %2661 = vmatpush.msra.mxu0 %v1600
        %2662 = vmatpush.msra.mxu0 %v1599
        %2663 = vmatpush.msra.mxu0 %v1598
        %2664 = vmatpush.msra.mxu0 %v1597
        %2665 = vmatpush.msra.mxu0 %v1596
        %2666 = vmatpush.msra.mxu0 %v1595
        %2667 = vmatpush.msra.mxu0 %v1594
        %2668 = vmatpush.msra.mxu0 %v1593
        %2669 = vmatpush.msra.mxu0 %v1592
        %2670 = vmatpush.msra.mxu0 %v1591
        %2671 = vmatmul.f32.gmra.mxu0 %v2195
        %v2672 = vpop.f32.mrf.mxu0
        %v2673 = vadd.f32 %v2653, %v2672
        %2674 = vdwg.mxu0
        %2675 = vmatpush.msra.mxu0 %v1622
        %2676 = vmatpush.msra.mxu0 %v1621
        %2677 = vmatpush.msra.mxu0 %v1620
        %2678 = vmatpush.msra.mxu0 %v1619
        %2679 = vmatpush.msra.mxu0 %v1618
        %2680 = vmatpush.msra.mxu0 %v1617
        %2681 = vmatpush.msra.mxu0 %v1616
        %2682 = vmatpush.msra.mxu0 %v1615
        %2683 = vmatpush.msra.mxu0 %v1614
        %2684 = vmatpush.msra.mxu0 %v1613
        %2685 = vmatpush.msra.mxu0 %v1612
        %2686 = vmatpush.msra.mxu0 %v1611
        %2687 = vmatpush.msra.mxu0 %v1610
        %2688 = vmatpush.msra.mxu0 %v1609
        %2689 = vmatpush.msra.mxu0 %v1608
        %2690 = vmatpush.msra.mxu0 %v1607
        %2691 = vmatmul.f32.gmra.mxu0 %v2226
        %v2692 = vpop.f32.mrf.mxu0
        %v2693 = vadd.f32 %v2673, %v2692
        %2694 = vdwg.mxu0
        %2695 = vmatpush.msra.mxu0 %v1638
        %2696 = vmatpush.msra.mxu0 %v1637
        %2697 = vmatpush.msra.mxu0 %v1636
        %2698 = vmatpush.msra.mxu0 %v1635
        %2699 = vmatpush.msra.mxu0 %v1634
        %2700 = vmatpush.msra.mxu0 %v1633
        %2701 = vmatpush.msra.mxu0 %v1632
        %2702 = vmatpush.msra.mxu0 %v1631
        %2703 = vmatpush.msra.mxu0 %v1630
        %2704 = vmatpush.msra.mxu0 %v1629
        %2705 = vmatpush.msra.mxu0 %v1628
        %2706 = vmatpush.msra.mxu0 %v1627
        %2707 = vmatpush.msra.mxu0 %v1626
        %2708 = vmatpush.msra.mxu0 %v1625
        %2709 = vmatpush.msra.mxu0 %v1624
        %2710 = vmatpush.msra.mxu0 %v1623
        %2711 = vmatmul.f32.gmra.mxu0 %v2257
        %v2712 = vpop.f32.mrf.mxu0
        %v2713 = vadd.f32 %v2693, %v2712
        %2714 = vdwg.mxu0
        %2715 = vmatpush.msra.mxu0 %v1654
        %2716 = vmatpush.msra.mxu0 %v1653
        %2717 = vmatpush.msra.mxu0 %v1652
        %2718 = vmatpush.msra.mxu0 %v1651
        %2719 = vmatpush.msra.mxu0 %v1650
        %2720 = vmatpush.msra.mxu0 %v1649
        %2721 = vmatpush.msra.mxu0 %v1648
        %2722 = vmatpush.msra.mxu0 %v1647
        %2723 = vmatpush.msra.mxu0 %v1646
        %2724 = vmatpush.msra.mxu0 %v1645
        %2725 = vmatpush.msra.mxu0 %v1644
        %2726 = vmatpush.msra.mxu0 %v1643
        %2727 = vmatpush.msra.mxu0 %v1642
        %2728 = vmatpush.msra.mxu0 %v1641
        %2729 = vmatpush.msra.mxu0 %v1640
        %2730 = vmatpush.msra.mxu0 %v1639
        %2731 = vmatmul.f32.gmra.mxu0 %v2288
        %v2732 = vpop.f32.mrf.mxu0
        %v2733 = vadd.f32 %v2713, %v2732
        %2734 = vdwg.mxu0
        %2735 = vmatpush.msra.mxu0 %v1670
        %2736 = vmatpush.msra.mxu0 %v1669
        %2737 = vmatpush.msra.mxu0 %v1668
        %2738 = vmatpush.msra.mxu0 %v1667
        %2739 = vmatpush.msra.mxu0 %v1666
        %2740 = vmatpush.msra.mxu0 %v1665
        %2741 = vmatpush.msra.mxu0 %v1664
        %2742 = vmatpush.msra.mxu0 %v1663
        %2743 = vmatpush.msra.mxu0 %v1662
        %2744 = vmatpush.msra.mxu0 %v1661
        %2745 = vmatpush.msra.mxu0 %v1660
        %2746 = vmatpush.msra.mxu0 %v1659
        %2747 = vmatpush.msra.mxu0 %v1658
        %2748 = vmatpush.msra.mxu0 %v1657
        %2749 = vmatpush.msra.mxu0 %v1656
        %2750 = vmatpush.msra.mxu0 %v1655
        %2751 = vmatmul.f32.gmra.mxu0 %v2319
        %v2752 = vpop.f32.mrf.mxu0
        %v2753 = vadd.f32 %v2733, %v2752
        %2754 = vdwg.mxu0
        %2755 = vmatpush.msra.mxu0 %v1686
        %2756 = vmatpush.msra.mxu0 %v1685
        %2757 = vmatpush.msra.mxu0 %v1684
        %2758 = vmatpush.msra.mxu0 %v1683
        %2759 = vmatpush.msra.mxu0 %v1682
        %2760 = vmatpush.msra.mxu0 %v1681
        %2761 = vmatpush.msra.mxu0 %v1680
        %2762 = vmatpush.msra.mxu0 %v1679
        %2763 = vmatpush.msra.mxu0 %v1678
        %2764 = vmatpush.msra.mxu0 %v1677
        %2765 = vmatpush.msra.mxu0 %v1676
        %2766 = vmatpush.msra.mxu0 %v1675
        %2767 = vmatpush.msra.mxu0 %v1674
        %2768 = vmatpush.msra.mxu0 %v1673
        %2769 = vmatpush.msra.mxu0 %v1672
        %2770 = vmatpush.msra.mxu0 %v1671
        %2771 = vmatmul.f32.gmra.mxu0 %v2350
        %v2772 = vpop.f32.mrf.mxu0
        %v2773 = vadd.f32 %v2753, %v2772
        %2774 = vdwg.mxu0
        %2775 = vmatpush.msra.mxu0 %v1702
        %2776 = vmatpush.msra.mxu0 %v1701
        %2777 = vmatpush.msra.mxu0 %v1700
        %2778 = vmatpush.msra.mxu0 %v1699
        %2779 = vmatpush.msra.mxu0 %v1698
        %2780 = vmatpush.msra.mxu0 %v1697
        %2781 = vmatpush.msra.mxu0 %v1696
        %2782 = vmatpush.msra.mxu0 %v1695
        %2783 = vmatpush.msra.mxu0 %v1694
        %2784 = vmatpush.msra.mxu0 %v1693
        %2785 = vmatpush.msra.mxu0 %v1692
        %2786 = vmatpush.msra.mxu0 %v1691
        %2787 = vmatpush.msra.mxu0 %v1690
        %2788 = vmatpush.msra.mxu0 %v1689
        %2789 = vmatpush.msra.mxu0 %v1688
        %2790 = vmatpush.msra.mxu0 %v1687
        %2791 = vmatmul.f32.gmra.mxu0 %v2381
        %v2792 = vpop.f32.mrf.mxu0
        %v2793 = vadd.f32 %v2773, %v2792
        %2794 = vdwg.mxu0
        %2795 = vmatpush.msra.mxu0 %v1718
        %2796 = vmatpush.msra.mxu0 %v1717
        %2797 = vmatpush.msra.mxu0 %v1716
        %2798 = vmatpush.msra.mxu0 %v1715
        %2799 = vmatpush.msra.mxu0 %v1714
        %2800 = vmatpush.msra.mxu0 %v1713
        %2801 = vmatpush.msra.mxu0 %v1712
        %2802 = vmatpush.msra.mxu0 %v1711
        %2803 = vmatpush.msra.mxu0 %v1710
        %2804 = vmatpush.msra.mxu0 %v1709
        %2805 = vmatpush.msra.mxu0 %v1708
        %2806 = vmatpush.msra.mxu0 %v1707
        %2807 = vmatpush.msra.mxu0 %v1706
        %2808 = vmatpush.msra.mxu0 %v1705
        %2809 = vmatpush.msra.mxu0 %v1704
        %2810 = vmatpush.msra.mxu0 %v1703
        %2811 = vmatmul.f32.gmra.mxu0 %v2412
        %v2812 = vpop.f32.mrf.mxu0
        %v2813 = vadd.f32 %v2793, %v2812
        %2814 = vdwg.mxu0
        %2815 = vmatpush.msra.mxu0 %v1734
        %2816 = vmatpush.msra.mxu0 %v1733
        %2817 = vmatpush.msra.mxu0 %v1732
        %2818 = vmatpush.msra.mxu0 %v1731
        %2819 = vmatpush.msra.mxu0 %v1730
        %2820 = vmatpush.msra.mxu0 %v1729
        %2821 = vmatpush.msra.mxu0 %v1728
        %2822 = vmatpush.msra.mxu0 %v1727
        %2823 = vmatpush.msra.mxu0 %v1726
        %2824 = vmatpush.msra.mxu0 %v1725
        %2825 = vmatpush.msra.mxu0 %v1724
        %2826 = vmatpush.msra.mxu0 %v1723
        %2827 = vmatpush.msra.mxu0 %v1722
        %2828 = vmatpush.msra.mxu0 %v1721
        %2829 = vmatpush.msra.mxu0 %v1720
        %2830 = vmatpush.msra.mxu0 %v1719
        %2831 = vmatmul.f32.gmra.mxu0 %v2443
        %v2832 = vpop.f32.mrf.mxu0
        %v2833 = vadd.f32 %v2813, %v2832
        %2834 = vdwg.mxu0
        %2835 = vmatpush.msra.mxu0 %v1750
        %2836 = vmatpush.msra.mxu0 %v1749
        %2837 = vmatpush.msra.mxu0 %v1748
        %2838 = vmatpush.msra.mxu0 %v1747
        %2839 = vmatpush.msra.mxu0 %v1746
        %2840 = vmatpush.msra.mxu0 %v1745
        %2841 = vmatpush.msra.mxu0 %v1744
        %2842 = vmatpush.msra.mxu0 %v1743
        %2843 = vmatpush.msra.mxu0 %v1742
        %2844 = vmatpush.msra.mxu0 %v1741
        %2845 = vmatpush.msra.mxu0 %v1740
        %2846 = vmatpush.msra.mxu0 %v1739
        %2847 = vmatpush.msra.mxu0 %v1738
        %2848 = vmatpush.msra.mxu0 %v1737
        %2849 = vmatpush.msra.mxu0 %v1736
        %2850 = vmatpush.msra.mxu0 %v1735
        %2851 = vmatmul.f32.gmra.mxu0 %v2474
        %v2852 = vpop.f32.mrf.mxu0
        %v2853 = vadd.f32 %v2833, %v2852
        %2854 = vdwg.mxu0
        %2855 = vmatpush.msra.mxu0 %v1766
        %2856 = vmatpush.msra.mxu0 %v1765
        %2857 = vmatpush.msra.mxu0 %v1764
        %2858 = vmatpush.msra.mxu0 %v1763
        %2859 = vmatpush.msra.mxu0 %v1762
        %2860 = vmatpush.msra.mxu0 %v1761
        %2861 = vmatpush.msra.mxu0 %v1760
        %2862 = vmatpush.msra.mxu0 %v1759
        %2863 = vmatpush.msra.mxu0 %v1758
        %2864 = vmatpush.msra.mxu0 %v1757
        %2865 = vmatpush.msra.mxu0 %v1756
        %2866 = vmatpush.msra.mxu0 %v1755
        %2867 = vmatpush.msra.mxu0 %v1754
        %2868 = vmatpush.msra.mxu0 %v1753
        %2869 = vmatpush.msra.mxu0 %v1752
        %2870 = vmatpush.msra.mxu0 %v1751
        %2871 = vmatmul.f32.gmra.mxu0 %v2505
        %v2872 = vpop.f32.mrf.mxu0
        %v2873 = vadd.f32 %v2853, %v2872
        %2874 = vdwg.mxu0
        %2875 = vmatpush.msra.mxu0 %v1782
        %2876 = vmatpush.msra.mxu0 %v1781
        %2877 = vmatpush.msra.mxu0 %v1780
        %2878 = vmatpush.msra.mxu0 %v1779
        %2879 = vmatpush.msra.mxu0 %v1778
        %2880 = vmatpush.msra.mxu0 %v1777
        %2881 = vmatpush.msra.mxu0 %v1776
        %2882 = vmatpush.msra.mxu0 %v1775
        %2883 = vmatpush.msra.mxu0 %v1774
        %2884 = vmatpush.msra.mxu0 %v1773
        %2885 = vmatpush.msra.mxu0 %v1772
        %2886 = vmatpush.msra.mxu0 %v1771
        %2887 = vmatpush.msra.mxu0 %v1770
        %2888 = vmatpush.msra.mxu0 %v1769
        %2889 = vmatpush.msra.mxu0 %v1768
        %2890 = vmatpush.msra.mxu0 %v1767
        %2891 = vmatmul.f32.gmra.mxu0 %v2536
        %v2892 = vpop.f32.mrf.mxu0
        %v2893 = vadd.f32 %v2873, %v2892
        %2894 = vdwg.mxu0
        %2895 = vmatpush.msra.mxu0 %v1798
        %2896 = vmatpush.msra.mxu0 %v1797
        %2897 = vmatpush.msra.mxu0 %v1796
        %2898 = vmatpush.msra.mxu0 %v1795
        %2899 = vmatpush.msra.mxu0 %v1794
        %2900 = vmatpush.msra.mxu0 %v1793
        %2901 = vmatpush.msra.mxu0 %v1792
        %2902 = vmatpush.msra.mxu0 %v1791
        %2903 = vmatpush.msra.mxu0 %v1790
        %2904 = vmatpush.msra.mxu0 %v1789
        %2905 = vmatpush.msra.mxu0 %v1788
        %2906 = vmatpush.msra.mxu0 %v1787
        %2907 = vmatpush.msra.mxu0 %v1786
        %2908 = vmatpush.msra.mxu0 %v1785
        %2909 = vmatpush.msra.mxu0 %v1784
        %2910 = vmatpush.msra.mxu0 %v1783
        %2911 = vmatmul.f32.gmra.mxu0 %v2567
        %v2912 = vpop.f32.mrf.mxu0
        %v2913 = vadd.f32 %v2893, %v2912
        %2914 = vdwg.mxu0
        %2915 = vmatpush.msra.mxu0 %v1814
        %2916 = vmatpush.msra.mxu0 %v1813
        %2917 = vmatpush.msra.mxu0 %v1812
        %2918 = vmatpush.msra.mxu0 %v1811
        %2919 = vmatpush.msra.mxu0 %v1810
        %2920 = vmatpush.msra.mxu0 %v1809
        %2921 = vmatpush.msra.mxu0 %v1808
        %2922 = vmatpush.msra.mxu0 %v1807
        %2923 = vmatpush.msra.mxu0 %v1806
        %2924 = vmatpush.msra.mxu0 %v1805
        %2925 = vmatpush.msra.mxu0 %v1804
        %2926 = vmatpush.msra.mxu0 %v1803
        %2927 = vmatpush.msra.mxu0 %v1802
        %2928 = vmatpush.msra.mxu0 %v1801
        %2929 = vmatpush.msra.mxu0 %v1800
        %2930 = vmatpush.msra.mxu0 %v1799
        %2931 = vmatmul.f32.gmra.mxu0 %v2598
        %v2932 = vpop.f32.mrf.mxu0
        %v2933 = vadd.f32 %v2913, %v2932
        %2934 = vdwg.mxu0
        %v2935 = vadd.f32 %v1558, %v2933
        %2936 = vst [vmem:[#allocation2] sm:$0x1] %v2935
        // Predicated region
        $region45: #{tpu_custom_call.1} parent=39 // pred_check
          %p2937 = pneg %p272
        $region46: #{tpu_custom_call.1} parent=39 // pred_check_branch
          %2939 = sbr.rel (%p2937) target = $region48
        $region47: #{tpu_custom_call.1} parent=39 // pred_region
          %v2940 = vld [vmem:[#allocation2] sm:$0x1]
          %v2941 = vld [vmem:[%s2] sm:$0x1]
          %v2942 = vadd.f32 %v2940, %v2941
          %v2943 = vmax.f32 %v2942, 0.0
          %v2944 = vld [vmem:[%s3] sm:$0xff]
          %v2945 = vld [vmem:[%s3 + $0x8] sm:$0xff]
          %v2946 = vld [vmem:[%s3 + $0x10] sm:$0xff]
          %v2947 = vld [vmem:[%s3 + $0x18] sm:$0xff]
          %v2948 = vld [vmem:[%s3 + $0x20] sm:$0xff]
          %v2949 = vld [vmem:[%s3 + $0x28] sm:$0xff]
          %v2950 = vld [vmem:[%s3 + $0x30] sm:$0xff]
          %v2951 = vld [vmem:[%s3 + $0x38] sm:$0xff]
          %v2952 = vld [vmem:[%s3 + $0x40] sm:$0xff]
          %v2953 = vld [vmem:[%s3 + $0x48] sm:$0xff]
          %v2954 = vld [vmem:[%s3 + $0x50] sm:$0xff]
          %v2955 = vld [vmem:[%s3 + $0x58] sm:$0xff]
          %v2956 = vld [vmem:[%s3 + $0x60] sm:$0xff]
          %v2957 = vld [vmem:[%s3 + $0x68] sm:$0xff]
          %v2958 = vld [vmem:[%s3 + $0x70] sm:$0xff]
          %v2959 = vld [vmem:[%s3 + $0x78] sm:$0xff]
          %v2960 = vld [vmem:[%s4] sm:$0x1]
          %2961 = vmatpush.msra.mxu0 %v2959
          %2962 = vmatpush.msra.mxu0 %v2958
          %2963 = vmatpush.msra.mxu0 %v2957
          %2964 = vmatpush.msra.mxu0 %v2956
          %2965 = vmatpush.msra.mxu0 %v2955
          %2966 = vmatpush.msra.mxu0 %v2954
          %2967 = vmatpush.msra.mxu0 %v2953
          %2968 = vmatpush.msra.mxu0 %v2952
          %2969 = vmatpush.msra.mxu0 %v2951
          %2970 = vmatpush.msra.mxu0 %v2950
          %2971 = vmatpush.msra.mxu0 %v2949
          %2972 = vmatpush.msra.mxu0 %v2948
          %2973 = vmatpush.msra.mxu0 %v2947
          %2974 = vmatpush.msra.mxu0 %v2946
          %2975 = vmatpush.msra.mxu0 %v2945
          %2976 = vmatpush.msra.mxu0 %v2944
          %2977 = vmatmul.f32.gmra.mxu0 %v2943
          %v2978 = vpop.f32.mrf.mxu0
          %v2979 = vadd.f32 %v2960, %v2978
          %2980 = vdwg.mxu0
          %vm2981 = vcmask 1040384
          %v2982 = vsel %vm2981, %v2979, -inf
          %2983 = vmax.xlane.f32.xlu0 %v2982
          %v2984 = vpop.xlane.xlu0 %2983
          %v2985 = vsub.f32 %v2979, %v2984
          %v2986 = vmul.f32 %v2985, 1.442695
          %v2987 = vpow.pop %v2986
          %v2988 = vsel %vm2981, %v2987, 0.0
          %2989 = vadd.xlane.f32.xlu0 %v2988
          %v2990 = vpop.xlane.xlu0 %2989
          %v2991 = vrcp.pop %v2990
          %v2992 = vmul.f32 %v2987, %v2991
          %2993 = vst [vmem:[%s255] sm:$0x1] %v2992
        $region48: #{tpu_custom_call.1} parent=39 // pred_fallthru
          _
        %s2994 = sand.u32 %s156, 1
        %s2995 = scalar_lea.sflag [#allocation4], %s2994
        %s2996 = sand.u32 %s156, 1
        %s2997 = scalar_lea.vmem [#allocation3], %s2996
        // Predicated region
        $region49: #{tpu_custom_call.1} parent=39 // pred_check
          %p2998 = pneg %p166
        $region50: #{tpu_custom_call.1} parent=39 // pred_check_branch
          %3000 = sbr.rel (%p2998) target = $region52
        $region51: #{tpu_custom_call.1} parent=39 // pred_region
          %3002 = vsyncadd %s2995, 0
          %s3003 = scalar_lea.hbm %s5, %s23
          %s3005 = sshll.u32 %s2997, 4
          %s3006 = int_to_ptr.vmem [resolvable:$true] %s3005
          %s3007 = sshll.u32 %s3003, 4
          %s3008 = int_to_ptr.hbm [resolvable:$true] %s3007
          %3010 = dma.vmem_to_hbm [thread:$0]  %s3006, 16, %s3008, %s2995
        $region52: #{tpu_custom_call.1} parent=39 // pred_fallthru
          _
      $region40: #{tpu_custom_call.1} parent=5 // pred_fallthru
        _
      %p3011 = scmp.le.s32.totalorder 2, %s14
      // Predicated region
      $region53: #{tpu_custom_call.1} parent=5 // pred_check
        %p3012 = pneg %p3011
      $region54: #{tpu_custom_call.1} parent=5 // pred_check_branch
        %3014 = sbr.rel (%p3012) target = $region56
      $region55: #{tpu_custom_call.1} parent=5 // pred_region
        %s3015 = ssub.s32 %s14, 2
        // Predicated region
        $region57: #{tpu_custom_call.1} parent=55 // pred_check
          %p3016 = pneg %p172
        $region58: #{tpu_custom_call.1} parent=55 // pred_check_branch
          %3018 = sbr.rel (%p3016) target = $region60
        $region59: #{tpu_custom_call.1} parent=55 // pred_region
          %s3019 = sand.u32 %s157, 1
          %s3020 = scalar_lea.sflag [#allocation4], %s3019
          %s3021 = sand.u32 %s157, 1
          %s3022 = scalar_lea.vmem [#allocation3], %s3021
          %3024 = dma.done %s3020, 16
        $region60: #{tpu_custom_call.1} parent=55 // pred_fallthru
          _
      $region56: #{tpu_custom_call.1} parent=5 // pred_fallthru
        _
    $region6: #{tpu_custom_call.1} parent=1 // loop_footer
      %s18 = sadd.s32 1, %s14
    $region7: #{tpu_custom_call.1} parent=1 // loop_footer_branch
      %13 = sbr.rel target = $region3
    $region8: #{tpu_custom_call.1} parent=1 // loop_exit
      _
    %3025 = vsyncpa [#allocation4], 1
    %s3026 = scalar_lea.sflag [#allocation4], 1
    %3027 = vsyncpa %s3026, 1

</llo_original>
